<compile_context>
chip_gen: v5e
topology: v5e:2x2
jax: 0.10.0
libtpu: 0.0.40
codegen_flags: <defaults>
</compile_context>

<pallas_src>
import jax
import jax.numpy as jnp
from jax import lax
from jax.experimental import pallas as pl
from jax.experimental.pallas import tpu as pltpu

ALL_ENTITIES = ['contributor', 'repository', 'pr', 'issue']
ALL_TASKS = ['ContributionRepo', 'PRReviewer', 'RepoMaintainer', 'SimDeveloper']
TASK_EMBEDDING_MAP = {
    'ContributionRepo': ['contributor', 'repository'],
    'PRReviewer': ['repository', 'pr', 'contributor'],
    'RepoMaintainer': ['repository', 'contributor'],
    'SimDeveloper': ['contributor', 'contributor'],
}
# Entities that actually influence the output ('issue' is unused by every task).
USED_ENTITIES = ['contributor', 'repository', 'pr']
H1, H2 = 512, 128
LANES = 128


# ---------------------------------------------------------------------------
# Kernel: grid over tasks; per-task head weights streamed, everything else
# VMEM-resident; select-then-sigmoid; lane-dense output written at last step.
# ---------------------------------------------------------------------------
def _task_head_kernel(
    task_oh_ref,                       # [B, T]  f32   (resident across steps)
    xc_ref, xr_ref, xp_ref,            # [B, n_e] f32  raw entity features (resident)
    wc_ref, bc_ref,                    # [n_c, D] f32, [1, D] f32 (resident)
    wr_ref, br_ref,
    wp_ref, bp_ref,
    w1_ref,                            # [1, 3D, 512]  bf16  (streamed per task)
    b1_ref,                            # [1, 1, 512]   f32   (streamed per task)
    w2_ref,                            # [1, 512, 128] bf16  (streamed per task)
    b2_ref,                            # [1, 1, 128]   f32   (streamed per task)
    w3_ref,                            # [1, 1, 128]   f32   (streamed per task)
    b3_ref,                            # [1, T] f32    (resident)
    o_ref,                             # [B, 128] f32  lane-dense output slab
    xall_ref,                          # scratch [B, 3D] bf16
    acc_ref,                           # scratch [B, 1]  f32
):
    t = pl.program_id(0)

    # --- step 0: entity projections -> uniform [c|r|p] feature slab; zero acc ---
    @pl.when(t == 0)
    def _init():
        pc = jnp.dot(xc_ref[...], wc_ref[...],
                     preferred_element_type=jnp.float32) + bc_ref[...]
        pr = jnp.dot(xr_ref[...], wr_ref[...],
                     preferred_element_type=jnp.float32) + br_ref[...]
        pp = jnp.dot(xp_ref[...], wp_ref[...],
                     preferred_element_type=jnp.float32) + bp_ref[...]
        xall_ref[...] = jnp.concatenate([pc, pr, pp], axis=-1).astype(jnp.bfloat16)
        acc_ref[...] = jnp.zeros_like(acc_ref)

    # --- head MLP of task `t` over the whole batch (w1 is pre-remapped so every
    #     task consumes the same [c|r|p] layout; unused entities hit zero rows) ---
    h1 = jnp.dot(xall_ref[...], w1_ref[0],
                 preferred_element_type=jnp.float32) + b1_ref[0]        # [B, 512]
    h1 = jnp.maximum(h1, 0.0).astype(jnp.bfloat16)
    h2 = jnp.dot(h1, w2_ref[0],
                 preferred_element_type=jnp.float32) + b2_ref[0]        # [B, 128]
    h2 = jnp.maximum(h2, 0.0)
    # 128 -> 1 final layer as VPU multiply + cross-lane reduce (no lane-sparse matmul)
    z = jnp.sum(h2 * w3_ref[0], axis=-1, keepdims=True)                 # [B, 1] raw logit

    # --- per-sample task select (== torch.max(task_one_hot, 1).indices) ---
    t_oh = task_oh_ref[...]
    Bsz, T = t_oh.shape
    col = lax.broadcasted_iota(jnp.int32, (Bsz, T), 1)
    row_max = jnp.max(t_oh, axis=-1, keepdims=True)
    first_idx = jnp.min(jnp.where(t_oh == row_max, col, T),
                        axis=-1, keepdims=True)                         # [B, 1]
    m_t = (first_idx == t).astype(jnp.float32)                          # [B, 1]
    acc_ref[...] += m_t * z                                             # select raw logit

    # --- last step: add selected b3, single sigmoid, store lane-dense slab ---
    @pl.when(t == pl.num_programs(0) - 1)
    def _finalize():
        sel = (col == first_idx).astype(jnp.float32)                    # [B, T]
        b3_sel = jnp.sum(sel * b3_ref[...], axis=-1, keepdims=True)     # [B, 1]
        out = jax.nn.sigmoid(acc_ref[...] + b3_sel)                     # [B, 1]
        o_ref[...] = jnp.broadcast_to(out, o_ref.shape)                 # [B, 128]


# ---------------------------------------------------------------------------
# Parameter construction (deterministic, PyTorch-default-style uniform init)
# ---------------------------------------------------------------------------
def _init_linear(key, n_in, n_out):
    kw, kb = jax.random.split(key)
    bound = 1.0 / jnp.sqrt(n_in)
    w = jax.random.uniform(kw, (n_in, n_out), jnp.float32, -bound, bound)
    b = jax.random.uniform(kb, (n_out,), jnp.float32, -bound, bound)
    return w, b


def init_params(key, embedding_input_sizes, embedding_dim):
    params = {'embeddings': {}, 'heads': {}}
    keys = jax.random.split(key, len(ALL_ENTITIES) + 3 * len(ALL_TASKS))
    ki = 0
    for ent in ALL_ENTITIES:
        params['embeddings'][ent] = _init_linear(
            keys[ki], embedding_input_sizes[ent], embedding_dim)
        ki += 1
    for task in ALL_TASKS:
        n_ent = len(TASK_EMBEDDING_MAP[task])
        w1, b1 = _init_linear(keys[ki], embedding_dim * n_ent, H1); ki += 1
        w2, b2 = _init_linear(keys[ki], H1, H2); ki += 1
        w3, b3 = _init_linear(keys[ki], H2, 1); ki += 1
        params['heads'][task] = (w1, b1, w2, b2, w3, b3)
    return params


# ---------------------------------------------------------------------------
# Forward pass: one pallas_call, grid over tasks, weight streaming pipelined.
# ---------------------------------------------------------------------------
def embedding_net_forward(params, task_one_hot, embs):
    B, T = task_one_hot.shape
    D = params['embeddings']['contributor'][0].shape[1]
    K = D * len(USED_ENTITIES)                      # uniform [c|r|p] width (96 @ D=32)
    emb_by_ent = dict(zip(ALL_ENTITIES, embs))
    ent_off = {e: i * D for i, e in enumerate(USED_ENTITIES)}

    # entity projection inputs / weights (only entities any task consumes)
    x_in, ew_in = [], []
    for ent in USED_ENTITIES:
        w, b = params['embeddings'][ent]
        x_in.append(emb_by_ent[ent])
        ew_in.extend([w, b.reshape(1, -1)])

    # Per-task first-layer weights remapped onto the uniform [c|r|p] input layout
    # (duplicated entities summed, unused entities left as zero rows); bf16 stream.
    w1_list = []
    for task in ALL_TASKS:
        w1 = params['heads'][task][0]                         # [D*n_ent, 512] f32
        w_eff = jnp.zeros((K, H1), jnp.float32)
        for slot, ent in enumerate(TASK_EMBEDDING_MAP[task]):
            off = ent_off[ent]
            w_eff = w_eff.at[off:off + D, :].add(w1[slot * D:(slot + 1) * D, :])
        w1_list.append(w_eff)
    w1s = jnp.stack(w1_list).astype(jnp.bfloat16)                                     # [T, K, 512]
    b1s = jnp.stack([params['heads'][t][1] for t in ALL_TASKS])[:, None, :]           # [T, 1, 512]
    w2s = jnp.stack([params['heads'][t][2] for t in ALL_TASKS]).astype(jnp.bfloat16)  # [T, 512, 128]
    b2s = jnp.stack([params['heads'][t][3] for t in ALL_TASKS])[:, None, :]           # [T, 1, 128]
    w3s = jnp.stack([params['heads'][t][4][:, 0] for t in ALL_TASKS])[:, None, :]     # [T, 1, 128]
    b3s = jnp.stack([params['heads'][t][5][0] for t in ALL_TASKS])[None, :]           # [1, T]

    def _whole(arr):                                 # whole-array, resident block
        nd = arr.ndim
        return pl.BlockSpec(arr.shape, lambda *_, n=nd: (0,) * n)

    in_specs = (
        [_whole(task_one_hot)]
        + [_whole(x) for x in x_in]
        + [_whole(a) for a in ew_in]
        + [
            pl.BlockSpec((1, K, H1), lambda t: (t, 0, 0)),    # w1  (streamed)
            pl.BlockSpec((1, 1, H1), lambda t: (t, 0, 0)),    # b1
            pl.BlockSpec((1, H1, H2), lambda t: (t, 0, 0)),   # w2  (streamed)
            pl.BlockSpec((1, 1, H2), lambda t: (t, 0, 0)),    # b2
            pl.BlockSpec((1, 1, H2), lambda t: (t, 0, 0)),    # w3 (row)
            _whole(b3s),                                      # b3 (resident)
        ]
    )

    out = pl.pallas_call(
        _task_head_kernel,
        out_shape=jax.ShapeDtypeStruct((B, LANES), jnp.float32),
        grid_spec=pltpu.PrefetchScalarGridSpec(
            num_scalar_prefetch=0,
            grid=(T,),
            in_specs=in_specs,
            out_specs=pl.BlockSpec((B, LANES), lambda t: (0, 0)),
            scratch_shapes=[
                pltpu.VMEM((B, K), jnp.bfloat16),   # projected [c|r|p] features
                pltpu.VMEM((B, 1), jnp.float32),    # selected-logit accumulator
            ],
        ),
        compiler_params=pltpu.CompilerParams(
            # task axis carries the accumulator / t==0 init -> must be sequential
            dimension_semantics=("arbitrary",),
        ),
    )(task_one_hot, *x_in, *ew_in, w1s, b1s, w2s, b2s, w3s, b3s)
    return out[:, 0]                                                     # [B]


# ---------------------------------------------------------------------------
# Pure-JAX reference (original per-sample task dispatch and per-task concat;
# mirrors the bf16 weight/activation quantization of the head layers so the
# comparison isolates kernel correctness, not precision).
# ---------------------------------------------------------------------------
def _reference_forward(params, task_one_hot, embs):
    proj = {}
    for ent, x in zip(ALL_ENTITIES, embs):
        w, b = params['embeddings'][ent]
        proj[ent] = x @ w + b
    task_idx = jnp.argmax(task_one_hot, axis=1)
    outs = []
    for i in range(task_one_hot.shape[0]):
        task = ALL_TASKS[int(task_idx[i])]
        ents = TASK_EMBEDDING_MAP[task]
        x = jnp.concatenate([proj[e][i] for e in ents], axis=-1)
        w1, b1, w2, b2, w3, b3 = params['heads'][task]
        h1 = jnp.maximum(
            jnp.dot(x.astype(jnp.bfloat16), w1.astype(jnp.bfloat16),
                    preferred_element_type=jnp.float32) + b1, 0.0)
        h2 = jnp.maximum(
            jnp.dot(h1.astype(jnp.bfloat16), w2.astype(jnp.bfloat16),
                    preferred_element_type=jnp.float32) + b2, 0.0)
        outs.append(jax.nn.sigmoid(jnp.dot(h2, w3) + b3))
    return jnp.stack(outs).squeeze()


if __name__ == "__main__":
    key = jax.random.PRNGKey(0)
    B = 8
    embedding_dim = 32
    embedding_input_sizes = {
        'contributor': 16, 'repository': 24, 'pr': 20, 'issue': 12,
    }

    k_params, k_task, *k_embs = jax.random.split(key, 2 + len(ALL_ENTITIES))
    params = init_params(k_params, embedding_input_sizes, embedding_dim)

    # random task assignment -> one-hot [B, 4]
    task_idx = jax.random.randint(k_task, (B,), 0, len(ALL_TASKS))
    task_one_hot = jax.nn.one_hot(task_idx, len(ALL_TASKS), dtype=jnp.float32)

    # per-entity raw feature inputs
    embs = [
        jax.random.normal(k, (B, embedding_input_sizes[ent]), jnp.float32)
        for k, ent in zip(k_embs, ALL_ENTITIES)
    ]

    fwd = jax.jit(embedding_net_forward)
    out = jax.block_until_ready(fwd(params, task_one_hot, embs))

    ref = _reference_forward(params, task_one_hot, embs)
    assert out.shape == (B,), out.shape
    assert jnp.allclose(out, ref, atol=2e-3, rtol=2e-3), (out, ref)

    print("KERNEL_OK")
</pallas_src>

<mosaic_0001>
module attributes {stable_mosaic.version = 11 : i64} {
  func.func @_task_head_kernel(%arg0: i32, %arg1: memref<8x4xf32, #tpu.memory_space<vmem>>, %arg2: memref<8x16xf32, #tpu.memory_space<vmem>>, %arg3: memref<8x24xf32, #tpu.memory_space<vmem>>, %arg4: memref<8x20xf32, #tpu.memory_space<vmem>>, %arg5: memref<16x32xf32, #tpu.memory_space<vmem>>, %arg6: memref<1x32xf32, #tpu.memory_space<vmem>>, %arg7: memref<24x32xf32, #tpu.memory_space<vmem>>, %arg8: memref<1x32xf32, #tpu.memory_space<vmem>>, %arg9: memref<20x32xf32, #tpu.memory_space<vmem>>, %arg10: memref<1x32xf32, #tpu.memory_space<vmem>>, %arg11: memref<1x96x512xbf16, #tpu.memory_space<vmem>>, %arg12: memref<1x1x512xf32, #tpu.memory_space<vmem>>, %arg13: memref<1x512x128xbf16, #tpu.memory_space<vmem>>, %arg14: memref<1x1x128xf32, #tpu.memory_space<vmem>>, %arg15: memref<1x1x128xf32, #tpu.memory_space<vmem>>, %arg16: memref<1x4xf32, #tpu.memory_space<vmem>>, %arg17: memref<8x128xf32, #tpu.memory_space<vmem>>, %arg18: memref<8x96xbf16, #tpu.memory_space<vmem>>, %arg19: memref<8x1xf32, #tpu.memory_space<vmem>>) attributes {dimension_semantics = [#tpu.dimension_semantics<arbitrary>], iteration_bounds = array<i64: 4>, scalar_prefetch = 0 : i64, scratch_operands = 2 : i64, tpu.core_type = #tpu.core_type<tc>, window_params = [{pipeline_mode = #tpu.pipeline_mode<synchronous>, transform_indices = @transform_0, window_bounds = array<i64: 8, 4>}, {pipeline_mode = #tpu.pipeline_mode<synchronous>, transform_indices = @transform_1, window_bounds = array<i64: 8, 16>}, {pipeline_mode = #tpu.pipeline_mode<synchronous>, transform_indices = @transform_2, window_bounds = array<i64: 8, 24>}, {pipeline_mode = #tpu.pipeline_mode<synchronous>, transform_indices = @transform_3, window_bounds = array<i64: 8, 20>}, {pipeline_mode = #tpu.pipeline_mode<synchronous>, transform_indices = @transform_4, window_bounds = array<i64: 16, 32>}, {pipeline_mode = #tpu.pipeline_mode<synchronous>, transform_indices = @transform_5, window_bounds = array<i64: 1, 32>}, {pipeline_mode = #tpu.pipeline_mode<synchronous>, transform_indices = @transform_6, window_bounds = array<i64: 24, 32>}, {pipeline_mode = #tpu.pipeline_mode<synchronous>, transform_indices = @transform_7, window_bounds = array<i64: 1, 32>}, {pipeline_mode = #tpu.pipeline_mode<synchronous>, transform_indices = @transform_8, window_bounds = array<i64: 20, 32>}, {pipeline_mode = #tpu.pipeline_mode<synchronous>, transform_indices = @transform_9, window_bounds = array<i64: 1, 32>}, {transform_indices = @transform_10, window_bounds = array<i64: 1, 96, 512>}, {transform_indices = @transform_11, window_bounds = array<i64: 1, 1, 512>}, {transform_indices = @transform_12, window_bounds = array<i64: 1, 512, 128>}, {transform_indices = @transform_13, window_bounds = array<i64: 1, 1, 128>}, {transform_indices = @transform_14, window_bounds = array<i64: 1, 1, 128>}, {pipeline_mode = #tpu.pipeline_mode<synchronous>, transform_indices = @transform_15, window_bounds = array<i64: 1, 4>}, {pipeline_mode = #tpu.pipeline_mode<synchronous>, transform_indices = @transform_16, window_bounds = array<i64: 8, 128>}]} {
    %c0_i32 = arith.constant 0 : i32
    %0 = arith.cmpi eq, %arg0, %c0_i32 : i32
    %1 = arith.extui %0 : i1 to i32
    %c0_i32_0 = arith.constant 0 : i32
    %2 = arith.cmpi ne, %1, %c0_i32_0 : i32
    scf.if %2 {
      %c0_30 = arith.constant 0 : index
      %c0_31 = arith.constant 0 : index
      %50 = vector.load %arg2[%c0_30, %c0_31] : memref<8x16xf32, #tpu.memory_space<vmem>>, vector<8x16xf32>
      %c0_32 = arith.constant 0 : index
      %c0_33 = arith.constant 0 : index
      %51 = vector.load %arg5[%c0_32, %c0_33] : memref<16x32xf32, #tpu.memory_space<vmem>>, vector<16x32xf32>
      %cst_34 = arith.constant dense<0.000000e+00> : vector<8x32xf32>
      %52 = tpu.matmul %50, %51, %cst_34 {dimension_numbers = #tpu.dot_dimension_numbers<[1], [0], [0], [1], [0, 0, 1, 1], [], []>} : vector<8x16xf32>, vector<16x32xf32>, vector<8x32xf32> -> vector<8x32xf32>
      %c0_35 = arith.constant 0 : index
      %c0_36 = arith.constant 0 : index
      %53 = vector.load %arg6[%c0_35, %c0_36] : memref<1x32xf32, #tpu.memory_space<vmem>>, vector<1x32xf32>
      %54 = vector.broadcast %53 : vector<1x32xf32> to vector<8x32xf32>
      %55 = arith.addf %52, %54 : vector<8x32xf32>
      %c0_37 = arith.constant 0 : index
      %c0_38 = arith.constant 0 : index
      %56 = vector.load %arg3[%c0_37, %c0_38] : memref<8x24xf32, #tpu.memory_space<vmem>>, vector<8x24xf32>
      %c0_39 = arith.constant 0 : index
      %c0_40 = arith.constant 0 : index
      %57 = vector.load %arg7[%c0_39, %c0_40] : memref<24x32xf32, #tpu.memory_space<vmem>>, vector<24x32xf32>
      %cst_41 = arith.constant dense<0.000000e+00> : vector<8x32xf32>
      %58 = tpu.matmul %56, %57, %cst_41 {dimension_numbers = #tpu.dot_dimension_numbers<[1], [0], [0], [1], [0, 0, 1, 1], [], []>} : vector<8x24xf32>, vector<24x32xf32>, vector<8x32xf32> -> vector<8x32xf32>
      %c0_42 = arith.constant 0 : index
      %c0_43 = arith.constant 0 : index
      %59 = vector.load %arg8[%c0_42, %c0_43] : memref<1x32xf32, #tpu.memory_space<vmem>>, vector<1x32xf32>
      %60 = vector.broadcast %59 : vector<1x32xf32> to vector<8x32xf32>
      %61 = arith.addf %58, %60 : vector<8x32xf32>
      %c0_44 = arith.constant 0 : index
      %c0_45 = arith.constant 0 : index
      %62 = vector.load %arg4[%c0_44, %c0_45] : memref<8x20xf32, #tpu.memory_space<vmem>>, vector<8x20xf32>
      %c0_46 = arith.constant 0 : index
      %c0_47 = arith.constant 0 : index
      %63 = vector.load %arg9[%c0_46, %c0_47] : memref<20x32xf32, #tpu.memory_space<vmem>>, vector<20x32xf32>
      %cst_48 = arith.constant dense<0.000000e+00> : vector<8x32xf32>
      %64 = tpu.matmul %62, %63, %cst_48 {dimension_numbers = #tpu.dot_dimension_numbers<[1], [0], [0], [1], [0, 0, 1, 1], [], []>} : vector<8x20xf32>, vector<20x32xf32>, vector<8x32xf32> -> vector<8x32xf32>
      %c0_49 = arith.constant 0 : index
      %c0_50 = arith.constant 0 : index
      %65 = vector.load %arg10[%c0_49, %c0_50] : memref<1x32xf32, #tpu.memory_space<vmem>>, vector<1x32xf32>
      %66 = vector.broadcast %65 : vector<1x32xf32> to vector<8x32xf32>
      %67 = arith.addf %64, %66 : vector<8x32xf32>
      %68 = tpu.concatenate %55, %61, %67 in 1 : vector<8x32xf32>, vector<8x32xf32>, vector<8x32xf32> -> vector<8x96xf32>
      %69 = arith.truncf %68 : vector<8x96xf32> to vector<8x96xbf16>
      %c0_51 = arith.constant 0 : index
      %c0_52 = arith.constant 0 : index
      %70 = vector.load %arg18[%c0_51, %c0_52] : memref<8x96xbf16, #tpu.memory_space<vmem>>, vector<8x96xbf16>
      tpu.vector_store %arg18[%c0_51, %c0_52], %69 {strides = array<i32>} : memref<8x96xbf16, #tpu.memory_space<vmem>>, vector<8x96xbf16>,
      %cst_53 = arith.constant 0.000000e+00 : f32
      %71 = vector.broadcast %cst_53 : f32 to vector<8x1xf32>
      %c0_54 = arith.constant 0 : index
      %c0_55 = arith.constant 0 : index
      %72 = vector.load %arg19[%c0_54, %c0_55] : memref<8x1xf32, #tpu.memory_space<vmem>>, vector<8x1xf32>
      tpu.vector_store %arg19[%c0_54, %c0_55], %71 {strides = array<i32>} : memref<8x1xf32, #tpu.memory_space<vmem>>, vector<8x1xf32>,
    } else {
    }
    %c0 = arith.constant 0 : index
    %c0_1 = arith.constant 0 : index
    %3 = vector.load %arg18[%c0, %c0_1] : memref<8x96xbf16, #tpu.memory_space<vmem>>, vector<8x96xbf16>
    %c0_2 = arith.constant 0 : index
    %c0_3 = arith.constant 0 : index
    %c0_4 = arith.constant 0 : index
    %4 = vector.load %arg11[%c0_2, %c0_3, %c0_4] : memref<1x96x512xbf16, #tpu.memory_space<vmem>>, vector<1x96x512xbf16>
    %5 = vector.shape_cast %4 : vector<1x96x512xbf16> to vector<96x512xbf16>
    %cst = arith.constant dense<0.000000e+00> : vector<8x512xf32>
    %6 = tpu.matmul %3, %5, %cst {dimension_numbers = #tpu.dot_dimension_numbers<[1], [0], [0], [1], [0, 0, 1, 1], [], []>} : vector<8x96xbf16>, vector<96x512xbf16>, vector<8x512xf32> -> vector<8x512xf32>
    %c0_5 = arith.constant 0 : index
    %c0_6 = arith.constant 0 : index
    %c0_7 = arith.constant 0 : index
    %7 = vector.load %arg12[%c0_5, %c0_6, %c0_7] : memref<1x1x512xf32, #tpu.memory_space<vmem>>, vector<1x1x512xf32>
    %8 = vector.shape_cast %7 : vector<1x1x512xf32> to vector<1x512xf32>
    %9 = vector.broadcast %8 : vector<1x512xf32> to vector<8x512xf32>
    %10 = arith.addf %6, %9 : vector<8x512xf32>
    %cst_8 = arith.constant 0.000000e+00 : f32
    %11 = vector.broadcast %cst_8 : f32 to vector<8x512xf32>
    %12 = arith.maximumf %10, %11 : vector<8x512xf32>
    %13 = arith.truncf %12 : vector<8x512xf32> to vector<8x512xbf16>
    %c0_9 = arith.constant 0 : index
    %c0_10 = arith.constant 0 : index
    %c0_11 = arith.constant 0 : index
    %14 = vector.load %arg13[%c0_9, %c0_10, %c0_11] : memref<1x512x128xbf16, #tpu.memory_space<vmem>>, vector<1x512x128xbf16>
    %15 = vector.shape_cast %14 : vector<1x512x128xbf16> to vector<512x128xbf16>
    %cst_12 = arith.constant dense<0.000000e+00> : vector<8x128xf32>
    %16 = tpu.matmul %13, %15, %cst_12 {dimension_numbers = #tpu.dot_dimension_numbers<[1], [0], [0], [1], [0, 0, 1, 1], [], []>} : vector<8x512xbf16>, vector<512x128xbf16>, vector<8x128xf32> -> vector<8x128xf32>
    %c0_13 = arith.constant 0 : index
    %c0_14 = arith.constant 0 : index
    %c0_15 = arith.constant 0 : index
    %17 = vector.load %arg14[%c0_13, %c0_14, %c0_15] : memref<1x1x128xf32, #tpu.memory_space<vmem>>, vector<1x1x128xf32>
    %18 = vector.shape_cast %17 : vector<1x1x128xf32> to vector<1x128xf32>
    %19 = vector.broadcast %18 : vector<1x128xf32> to vector<8x128xf32>
    %20 = arith.addf %16, %19 : vector<8x128xf32>
    %cst_16 = arith.constant 0.000000e+00 : f32
    %21 = vector.broadcast %cst_16 : f32 to vector<8x128xf32>
    %22 = arith.maximumf %20, %21 : vector<8x128xf32>
    %c0_17 = arith.constant 0 : index
    %c0_18 = arith.constant 0 : index
    %c0_19 = arith.constant 0 : index
    %23 = vector.load %arg15[%c0_17, %c0_18, %c0_19] : memref<1x1x128xf32, #tpu.memory_space<vmem>>, vector<1x1x128xf32>
    %24 = vector.shape_cast %23 : vector<1x1x128xf32> to vector<1x128xf32>
    %25 = vector.broadcast %24 : vector<1x128xf32> to vector<8x128xf32>
    %26 = arith.mulf %22, %25 : vector<8x128xf32>
    %cst_20 = arith.constant dense<0.000000e+00> : vector<8xf32>
    %27 = vector.multi_reduction <add>, %26, %cst_20 [1] : vector<8x128xf32> to vector<8xf32>
    %28 = vector.shape_cast %27 : vector<8xf32> to vector<8x1xf32>
    %c0_21 = arith.constant 0 : index
    %c0_22 = arith.constant 0 : index
    %29 = vector.load %arg1[%c0_21, %c0_22] : memref<8x4xf32, #tpu.memory_space<vmem>>, vector<8x4xf32>
    %30 = tpu.iota {dimensions = array<i32: 1>} : vector<8x4xi32>
    %cst_23 = arith.constant dense<0xFF800000> : vector<8xf32>
    %31 = vector.multi_reduction <maximumf>, %29, %cst_23 [1] : vector<8x4xf32> to vector<8xf32>
    %32 = vector.shape_cast %31 : vector<8xf32> to vector<8x1xf32>
    %33 = vector.broadcast %32 : vector<8x1xf32> to vector<8x4xf32>
    %34 = arith.cmpf oeq, %29, %33 : vector<8x4xf32>
    %c4_i32 = arith.constant 4 : i32
    %35 = vector.broadcast %c4_i32 : i32 to vector<8x4xi32>
    %36 = arith.select %34, %30, %35 : vector<8x4xi1>, vector<8x4xi32>
    %cst_24 = arith.constant dense<2147483647> : vector<8xi32>
    %37 = vector.multi_reduction <minsi>, %36, %cst_24 [1] : vector<8x4xi32> to vector<8xi32>
    %38 = vector.shape_cast %37 : vector<8xi32> to vector<8x1xi32>
    %39 = vector.broadcast %arg0 : i32 to vector<8x1xi32>
    %40 = arith.cmpi eq, %38, %39 : vector<8x1xi32>
    %41 = arith.extui %40 : vector<8x1xi1> to vector<8x1xi32>
    %42 = arith.sitofp %41 : vector<8x1xi32> to vector<8x1xf32>
    %c0_25 = arith.constant 0 : index
    %c0_26 = arith.constant 0 : index
    %43 = vector.load %arg19[%c0_25, %c0_26] : memref<8x1xf32, #tpu.memory_space<vmem>>, vector<8x1xf32>
    %44 = arith.mulf %42, %28 : vector<8x1xf32>
    %45 = arith.addf %43, %44 : vector<8x1xf32>
    %c0_27 = arith.constant 0 : index
    %c0_28 = arith.constant 0 : index
    %46 = vector.load %arg19[%c0_27, %c0_28] : memref<8x1xf32, #tpu.memory_space<vmem>>, vector<8x1xf32>
    tpu.vector_store %arg19[%c0_27, %c0_28], %45 {strides = array<i32>} : memref<8x1xf32, #tpu.memory_space<vmem>>, vector<8x1xf32>,
    %c3_i32 = arith.constant 3 : i32
    %47 = arith.cmpi eq, %arg0, %c3_i32 : i32
    %48 = arith.extui %47 : i1 to i32
    %c0_i32_29 = arith.constant 0 : i32
    %49 = arith.cmpi ne, %48, %c0_i32_29 : i32
    scf.if %49 {
      %50 = vector.broadcast %38 : vector<8x1xi32> to vector<8x4xi32>
      %51 = arith.cmpi eq, %30, %50 : vector<8x4xi32>
      %52 = arith.extui %51 : vector<8x4xi1> to vector<8x4xi32>
      %53 = arith.sitofp %52 : vector<8x4xi32> to vector<8x4xf32>
      %c0_30 = arith.constant 0 : index
      %c0_31 = arith.constant 0 : index
      %54 = vector.load %arg16[%c0_30, %c0_31] : memref<1x4xf32, #tpu.memory_space<vmem>>, vector<1x4xf32>
      %55 = vector.broadcast %54 : vector<1x4xf32> to vector<8x4xf32>
      %56 = arith.mulf %53, %55 : vector<8x4xf32>
      %cst_32 = arith.constant dense<0.000000e+00> : vector<8xf32>
      %57 = vector.multi_reduction <add>, %56, %cst_32 [1] : vector<8x4xf32> to vector<8xf32>
      %58 = vector.shape_cast %57 : vector<8xf32> to vector<8x1xf32>
      %c0_33 = arith.constant 0 : index
      %c0_34 = arith.constant 0 : index
      %59 = vector.load %arg19[%c0_33, %c0_34] : memref<8x1xf32, #tpu.memory_space<vmem>>, vector<8x1xf32>
      %60 = arith.addf %59, %58 : vector<8x1xf32>
      %61 = arith.negf %60 : vector<8x1xf32>
      %62 = math.exp %61 : vector<8x1xf32>
      %cst_35 = arith.constant 1.000000e+00 : f32
      %63 = vector.broadcast %cst_35 : f32 to vector<8x1xf32>
      %64 = arith.addf %63, %62 : vector<8x1xf32>
      %65 = arith.divf %63, %64 : vector<8x1xf32>
      %66 = vector.shape_cast %65 : vector<8x1xf32> to vector<8x1xf32>
      %67 = vector.broadcast %66 : vector<8x1xf32> to vector<8x128xf32>
      %c0_36 = arith.constant 0 : index
      %c0_37 = arith.constant 0 : index
      %68 = vector.load %arg17[%c0_36, %c0_37] : memref<8x128xf32, #tpu.memory_space<vmem>>, vector<8x128xf32>
      tpu.vector_store %arg17[%c0_36, %c0_37], %67 {strides = array<i32>} : memref<8x128xf32, #tpu.memory_space<vmem>>, vector<8x128xf32>,
    } else {
    }
    return
  }
  func.func @transform_0(%arg0: i32) -> (i32, i32) {
    %c0_i32 = arith.constant 0 : i32
    %c0_i32_0 = arith.constant 0 : i32
    %c0_i32_1 = arith.constant 0 : i32
    return %c0_i32, %c0_i32_0 : i32, i32
  }
  func.func @transform_1(%arg0: i32) -> (i32, i32) {
    %c0_i32 = arith.constant 0 : i32
    %c0_i32_0 = arith.constant 0 : i32
    %c0_i32_1 = arith.constant 0 : i32
    return %c0_i32, %c0_i32_0 : i32, i32
  }
  func.func @transform_2(%arg0: i32) -> (i32, i32) {
    %c0_i32 = arith.constant 0 : i32
    %c0_i32_0 = arith.constant 0 : i32
    %c0_i32_1 = arith.constant 0 : i32
    return %c0_i32, %c0_i32_0 : i32, i32
  }
  func.func @transform_3(%arg0: i32) -> (i32, i32) {
    %c0_i32 = arith.constant 0 : i32
    %c0_i32_0 = arith.constant 0 : i32
    %c0_i32_1 = arith.constant 0 : i32
    return %c0_i32, %c0_i32_0 : i32, i32
  }
  func.func @transform_4(%arg0: i32) -> (i32, i32) {
    %c0_i32 = arith.constant 0 : i32
    %c0_i32_0 = arith.constant 0 : i32
    %c0_i32_1 = arith.constant 0 : i32
    return %c0_i32, %c0_i32_0 : i32, i32
  }
  func.func @transform_5(%arg0: i32) -> (i32, i32) {
    %c0_i32 = arith.constant 0 : i32
    %c0_i32_0 = arith.constant 0 : i32
    %c0_i32_1 = arith.constant 0 : i32
    return %c0_i32, %c0_i32_0 : i32, i32
  }
  func.func @transform_6(%arg0: i32) -> (i32, i32) {
    %c0_i32 = arith.constant 0 : i32
    %c0_i32_0 = arith.constant 0 : i32
    %c0_i32_1 = arith.constant 0 : i32
    return %c0_i32, %c0_i32_0 : i32, i32
  }
  func.func @transform_7(%arg0: i32) -> (i32, i32) {
    %c0_i32 = arith.constant 0 : i32
    %c0_i32_0 = arith.constant 0 : i32
    %c0_i32_1 = arith.constant 0 : i32
    return %c0_i32, %c0_i32_0 : i32, i32
  }
  func.func @transform_8(%arg0: i32) -> (i32, i32) {
    %c0_i32 = arith.constant 0 : i32
    %c0_i32_0 = arith.constant 0 : i32
    %c0_i32_1 = arith.constant 0 : i32
    return %c0_i32, %c0_i32_0 : i32, i32
  }
  func.func @transform_9(%arg0: i32) -> (i32, i32) {
    %c0_i32 = arith.constant 0 : i32
    %c0_i32_0 = arith.constant 0 : i32
    %c0_i32_1 = arith.constant 0 : i32
    return %c0_i32, %c0_i32_0 : i32, i32
  }
  func.func @transform_10(%arg0: i32) -> (i32, i32, i32) {
    %c0_i32 = arith.constant 0 : i32
    %c0_i32_0 = arith.constant 0 : i32
    %c0_i32_1 = arith.constant 0 : i32
    return %arg0, %c0_i32, %c0_i32_0 : i32, i32, i32
  }
  func.func @transform_11(%arg0: i32) -> (i32, i32, i32) {
    %c0_i32 = arith.constant 0 : i32
    %c0_i32_0 = arith.constant 0 : i32
    %c0_i32_1 = arith.constant 0 : i32
    return %arg0, %c0_i32, %c0_i32_0 : i32, i32, i32
  }
  func.func @transform_12(%arg0: i32) -> (i32, i32, i32) {
    %c0_i32 = arith.constant 0 : i32
    %c0_i32_0 = arith.constant 0 : i32
    %c0_i32_1 = arith.constant 0 : i32
    return %arg0, %c0_i32, %c0_i32_0 : i32, i32, i32
  }
  func.func @transform_13(%arg0: i32) -> (i32, i32, i32) {
    %c0_i32 = arith.constant 0 : i32
    %c0_i32_0 = arith.constant 0 : i32
    %c0_i32_1 = arith.constant 0 : i32
    return %arg0, %c0_i32, %c0_i32_0 : i32, i32, i32
  }
  func.func @transform_14(%arg0: i32) -> (i32, i32, i32) {
    %c0_i32 = arith.constant 0 : i32
    %c0_i32_0 = arith.constant 0 : i32
    %c0_i32_1 = arith.constant 0 : i32
    return %arg0, %c0_i32, %c0_i32_0 : i32, i32, i32
  }
  func.func @transform_15(%arg0: i32) -> (i32, i32) {
    %c0_i32 = arith.constant 0 : i32
    %c0_i32_0 = arith.constant 0 : i32
    %c0_i32_1 = arith.constant 0 : i32
    return %c0_i32, %c0_i32_0 : i32, i32
  }
  func.func @transform_16(%arg0: i32) -> (i32, i32) {
    %c0_i32 = arith.constant 0 : i32
    %c0_i32_0 = arith.constant 0 : i32
    %c0_i32_1 = arith.constant 0 : i32
    return %c0_i32, %c0_i32_0 : i32, i32
  }
}

</mosaic_0001>

<llo_original>
// kernel: embedding_net_forward.1
$region0: #{embedding_net_forward.1}
  #allocation0 [shape = 'u32[]', space=smem, size = 0x4, offset = 0x4, fixed_abs, tag = 'smem constant byte address 0x4 - core index']
  #allocation1 [shape = 'u32[72,128]{1,0:T(1,128)}', space=vmem, size = 0x9000, scoped, tag = 'internal scratch']
  #allocation2 [shape = 'bf16[8,96]{1,0:T(8,128)(2,1)}', space=vmem, size = 0x800, scoped, tag = 'scratch operand']
  #allocation3 [shape = 'f32[8,1]{1,0:T(8,128)}', space=vmem, size = 0x1000, scoped, tag = 'scratch operand']
  %s0 = inlined_call_operand.vmem [shape: f32[8,4], index: 0, kind: input, shape index: {}]
  %s1 = inlined_call_operand.vmem [shape: f32[8,16], index: 1, kind: input, shape index: {}]
  %s2 = inlined_call_operand.vmem [shape: f32[8,24], index: 2, kind: input, shape index: {}]
  %s3 = inlined_call_operand.vmem [shape: f32[8,20], index: 3, kind: input, shape index: {}]
  %s4 = inlined_call_operand.vmem [shape: f32[16,32], index: 4, kind: input, shape index: {}]
  %s5 = inlined_call_operand.vmem [shape: f32[1,32], index: 5, kind: input, shape index: {}]
  %s6 = inlined_call_operand.vmem [shape: f32[24,32], index: 6, kind: input, shape index: {}]
  %s7 = inlined_call_operand.vmem [shape: f32[1,32], index: 7, kind: input, shape index: {}]
  %s8 = inlined_call_operand.vmem [shape: f32[20,32], index: 8, kind: input, shape index: {}]
  %s9 = inlined_call_operand.vmem [shape: f32[1,32], index: 9, kind: input, shape index: {}]
  %s10 = inlined_call_operand.vmem [shape: bf16[4,96,512], index: 10, kind: input, shape index: {}]
  %s11 = inlined_call_operand.vmem [shape: f32[4,1,512], index: 11, kind: input, shape index: {}]
  %s12 = inlined_call_operand.vmem [shape: bf16[4,512,128], index: 12, kind: input, shape index: {}]
  %s13 = inlined_call_operand.vmem [shape: f32[4,1,128], index: 13, kind: input, shape index: {}]
  %s14 = inlined_call_operand.vmem [shape: f32[4,1,128], index: 14, kind: input, shape index: {}]
  %s15 = inlined_call_operand.vmem [shape: f32[1,4], index: 15, kind: input, shape index: {}]
  %s16 = inlined_call_operand.vmem [shape: f32[8,128], index: 16, kind: output, shape index: {}]
  %s17 = sld [smem:[#allocation0]]
  $region105: #{embedding_net_forward.1} parent=0
    _
  %s19 = ssub.s32 1, %s17
  %s20 = scalar_select 0, %s19, %s17
  loop: start=0, step=1, limit=6
  $region2: #{embedding_net_forward.1} parent=0 // loop_pre_header
    _
  $region3: #{embedding_net_forward.1} parent=0 // loop_header
    %s22 = sphi 0, %s26
    %p23 = scmp.ge.s32.totalorder %s22, 6
    %s30 = sphi 0, %s30
    %s32 = sphi 0, %s30
    %s33 = sphi 0, %s32
    %s47 = sphi 0, %s33
    %s51 = sphi 0, %s51
    %s53 = sphi 0, %s51
    %s54 = sphi 0, %s53
    %s68 = sphi 0, %s54
    %s72 = sphi 0, %s72
    %s74 = sphi 0, %s72
    %s75 = sphi 0, %s74
    %s89 = sphi 0, %s75
    %s93 = sphi 0, %s93
    %s95 = sphi 0, %s93
    %s96 = sphi 0, %s95
    %s110 = sphi 0, %s96
    %s114 = sphi 0, %s114
    %s116 = sphi 0, %s114
    %s117 = sphi 0, %s116
    %s131 = sphi 0, %s117
    %s135 = sphi 0, %s135
    %s137 = sphi 0, %s135
    %s138 = sphi 0, %s137
    %s152 = sphi 0, %s138
    %s156 = sphi 0, %s156
    %s158 = sphi 0, %s156
    %s159 = sphi 0, %s158
    %s173 = sphi 0, %s159
    %s177 = sphi 0, %s177
    %s179 = sphi 0, %s177
    %s180 = sphi 0, %s179
    %s194 = sphi 0, %s180
    %s198 = sphi 0, %s198
    %s200 = sphi 0, %s198
    %s201 = sphi 0, %s200
    %s215 = sphi 0, %s201
    %s219 = sphi 0, %s219
    %s221 = sphi 0, %s219
    %s222 = sphi 0, %s221
    %s236 = sphi 0, %s222
    %s242 = sphi 0, %s244
    %s245 = sphi 0, %s242
    %s246 = sphi 0, %s245
    %s262 = sphi 0, %s246
    %s268 = sphi 0, %s270
    %s271 = sphi 0, %s268
    %s272 = sphi 0, %s271
    %s288 = sphi 0, %s272
    %s294 = sphi 0, %s296
    %s297 = sphi 0, %s294
    %s298 = sphi 0, %s297
    %s314 = sphi 0, %s298
    %s320 = sphi 0, %s322
    %s323 = sphi 0, %s320
    %s324 = sphi 0, %s323
    %s340 = sphi 0, %s324
    %s346 = sphi 0, %s348
    %s349 = sphi 0, %s346
    %s350 = sphi 0, %s349
    %s366 = sphi 0, %s350
    %s370 = sphi 0, %s370
    %s372 = sphi 0, %s370
    %s373 = sphi 0, %s372
    %s387 = sphi 0, %s373
    %s391 = sphi 0, %s391
    %s393 = sphi 0, %s391
    %s394 = sphi 0, %s393
    %s408 = sphi 0, %s394
  $region4: #{embedding_net_forward.1} parent=0 // loop_header_branch
    %25 = sbr.rel (%p23) target = $region8
  $region5: #{embedding_net_forward.1} parent=0 // loop_body
    %s27 = ssub.s32 %s22, 1
    %s28 = ssub.s32 %s22, 2
    %s29 = sadd.s32 %s22, 1
    %s31 = sadd.s32 %s30, 1
    %p34 = scmp.eq.s32.totalorder %s22, 3
    %p35 = scmp.ne.s32.totalorder %s30, %s32
    %p36 = scmp.eq.s32.totalorder %s22, 0
    %p37 = por %p35, %p36
    %p38 = scmp.ne.s32.totalorder %s30, %s32
    %p39 = scmp.eq.s32.totalorder %s27, 3
    %p40 = por %p38, %p39
    %p41 = scmp.ne.s32.totalorder %s32, %s33
    %p42 = scmp.eq.s32.totalorder %s27, 0
    %p43 = por %p41, %p42
    %p44 = scmp.ne.s32.totalorder %s32, %s33
    %p45 = scmp.eq.s32.totalorder %s28, 3
    %p46 = por %p44, %p45
    %p48 = scmp.ne.s32.totalorder %s33, %s47
    %p49 = scmp.eq.s32.totalorder %s28, 0
    %p50 = por %p48, %p49
    %s52 = sadd.s32 %s51, 1
    %p55 = scmp.eq.s32.totalorder %s22, 3
    %p56 = scmp.ne.s32.totalorder %s51, %s53
    %p57 = scmp.eq.s32.totalorder %s22, 0
    %p58 = por %p56, %p57
    %p59 = scmp.ne.s32.totalorder %s51, %s53
    %p60 = scmp.eq.s32.totalorder %s27, 3
    %p61 = por %p59, %p60
    %p62 = scmp.ne.s32.totalorder %s53, %s54
    %p63 = scmp.eq.s32.totalorder %s27, 0
    %p64 = por %p62, %p63
    %p65 = scmp.ne.s32.totalorder %s53, %s54
    %p66 = scmp.eq.s32.totalorder %s28, 3
    %p67 = por %p65, %p66
    %p69 = scmp.ne.s32.totalorder %s54, %s68
    %p70 = scmp.eq.s32.totalorder %s28, 0
    %p71 = por %p69, %p70
    %s73 = sadd.s32 %s72, 1
    %p76 = scmp.eq.s32.totalorder %s22, 3
    %p77 = scmp.ne.s32.totalorder %s72, %s74
    %p78 = scmp.eq.s32.totalorder %s22, 0
    %p79 = por %p77, %p78
    %p80 = scmp.ne.s32.totalorder %s72, %s74
    %p81 = scmp.eq.s32.totalorder %s27, 3
    %p82 = por %p80, %p81
    %p83 = scmp.ne.s32.totalorder %s74, %s75
    %p84 = scmp.eq.s32.totalorder %s27, 0
    %p85 = por %p83, %p84
    %p86 = scmp.ne.s32.totalorder %s74, %s75
    %p87 = scmp.eq.s32.totalorder %s28, 3
    %p88 = por %p86, %p87
    %p90 = scmp.ne.s32.totalorder %s75, %s89
    %p91 = scmp.eq.s32.totalorder %s28, 0
    %p92 = por %p90, %p91
    %s94 = sadd.s32 %s93, 1
    %p97 = scmp.eq.s32.totalorder %s22, 3
    %p98 = scmp.ne.s32.totalorder %s93, %s95
    %p99 = scmp.eq.s32.totalorder %s22, 0
    %p100 = por %p98, %p99
    %p101 = scmp.ne.s32.totalorder %s93, %s95
    %p102 = scmp.eq.s32.totalorder %s27, 3
    %p103 = por %p101, %p102
    %p104 = scmp.ne.s32.totalorder %s95, %s96
    %p105 = scmp.eq.s32.totalorder %s27, 0
    %p106 = por %p104, %p105
    %p107 = scmp.ne.s32.totalorder %s95, %s96
    %p108 = scmp.eq.s32.totalorder %s28, 3
    %p109 = por %p107, %p108
    %p111 = scmp.ne.s32.totalorder %s96, %s110
    %p112 = scmp.eq.s32.totalorder %s28, 0
    %p113 = por %p111, %p112
    %s115 = sadd.s32 %s114, 1
    %p118 = scmp.eq.s32.totalorder %s22, 3
    %p119 = scmp.ne.s32.totalorder %s114, %s116
    %p120 = scmp.eq.s32.totalorder %s22, 0
    %p121 = por %p119, %p120
    %p122 = scmp.ne.s32.totalorder %s114, %s116
    %p123 = scmp.eq.s32.totalorder %s27, 3
    %p124 = por %p122, %p123
    %p125 = scmp.ne.s32.totalorder %s116, %s117
    %p126 = scmp.eq.s32.totalorder %s27, 0
    %p127 = por %p125, %p126
    %p128 = scmp.ne.s32.totalorder %s116, %s117
    %p129 = scmp.eq.s32.totalorder %s28, 3
    %p130 = por %p128, %p129
    %p132 = scmp.ne.s32.totalorder %s117, %s131
    %p133 = scmp.eq.s32.totalorder %s28, 0
    %p134 = por %p132, %p133
    %s136 = sadd.s32 %s135, 1
    %p139 = scmp.eq.s32.totalorder %s22, 3
    %p140 = scmp.ne.s32.totalorder %s135, %s137
    %p141 = scmp.eq.s32.totalorder %s22, 0
    %p142 = por %p140, %p141
    %p143 = scmp.ne.s32.totalorder %s135, %s137
    %p144 = scmp.eq.s32.totalorder %s27, 3
    %p145 = por %p143, %p144
    %p146 = scmp.ne.s32.totalorder %s137, %s138
    %p147 = scmp.eq.s32.totalorder %s27, 0
    %p148 = por %p146, %p147
    %p149 = scmp.ne.s32.totalorder %s137, %s138
    %p150 = scmp.eq.s32.totalorder %s28, 3
    %p151 = por %p149, %p150
    %p153 = scmp.ne.s32.totalorder %s138, %s152
    %p154 = scmp.eq.s32.totalorder %s28, 0
    %p155 = por %p153, %p154
    %s157 = sadd.s32 %s156, 1
    %p160 = scmp.eq.s32.totalorder %s22, 3
    %p161 = scmp.ne.s32.totalorder %s156, %s158
    %p162 = scmp.eq.s32.totalorder %s22, 0
    %p163 = por %p161, %p162
    %p164 = scmp.ne.s32.totalorder %s156, %s158
    %p165 = scmp.eq.s32.totalorder %s27, 3
    %p166 = por %p164, %p165
    %p167 = scmp.ne.s32.totalorder %s158, %s159
    %p168 = scmp.eq.s32.totalorder %s27, 0
    %p169 = por %p167, %p168
    %p170 = scmp.ne.s32.totalorder %s158, %s159
    %p171 = scmp.eq.s32.totalorder %s28, 3
    %p172 = por %p170, %p171
    %p174 = scmp.ne.s32.totalorder %s159, %s173
    %p175 = scmp.eq.s32.totalorder %s28, 0
    %p176 = por %p174, %p175
    %s178 = sadd.s32 %s177, 1
    %p181 = scmp.eq.s32.totalorder %s22, 3
    %p182 = scmp.ne.s32.totalorder %s177, %s179
    %p183 = scmp.eq.s32.totalorder %s22, 0
    %p184 = por %p182, %p183
    %p185 = scmp.ne.s32.totalorder %s177, %s179
    %p186 = scmp.eq.s32.totalorder %s27, 3
    %p187 = por %p185, %p186
    %p188 = scmp.ne.s32.totalorder %s179, %s180
    %p189 = scmp.eq.s32.totalorder %s27, 0
    %p190 = por %p188, %p189
    %p191 = scmp.ne.s32.totalorder %s179, %s180
    %p192 = scmp.eq.s32.totalorder %s28, 3
    %p193 = por %p191, %p192
    %p195 = scmp.ne.s32.totalorder %s180, %s194
    %p196 = scmp.eq.s32.totalorder %s28, 0
    %p197 = por %p195, %p196
    %s199 = sadd.s32 %s198, 1
    %p202 = scmp.eq.s32.totalorder %s22, 3
    %p203 = scmp.ne.s32.totalorder %s198, %s200
    %p204 = scmp.eq.s32.totalorder %s22, 0
    %p205 = por %p203, %p204
    %p206 = scmp.ne.s32.totalorder %s198, %s200
    %p207 = scmp.eq.s32.totalorder %s27, 3
    %p208 = por %p206, %p207
    %p209 = scmp.ne.s32.totalorder %s200, %s201
    %p210 = scmp.eq.s32.totalorder %s27, 0
    %p211 = por %p209, %p210
    %p212 = scmp.ne.s32.totalorder %s200, %s201
    %p213 = scmp.eq.s32.totalorder %s28, 3
    %p214 = por %p212, %p213
    %p216 = scmp.ne.s32.totalorder %s201, %s215
    %p217 = scmp.eq.s32.totalorder %s28, 0
    %p218 = por %p216, %p217
    %s220 = sadd.s32 %s219, 1
    %p223 = scmp.eq.s32.totalorder %s22, 3
    %p224 = scmp.ne.s32.totalorder %s219, %s221
    %p225 = scmp.eq.s32.totalorder %s22, 0
    %p226 = por %p224, %p225
    %p227 = scmp.ne.s32.totalorder %s219, %s221
    %p228 = scmp.eq.s32.totalorder %s27, 3
    %p229 = por %p227, %p228
    %p230 = scmp.ne.s32.totalorder %s221, %s222
    %p231 = scmp.eq.s32.totalorder %s27, 0
    %p232 = por %p230, %p231
    %p233 = scmp.ne.s32.totalorder %s221, %s222
    %p234 = scmp.eq.s32.totalorder %s28, 3
    %p235 = por %p233, %p234
    %p237 = scmp.ne.s32.totalorder %s222, %s236
    %p238 = scmp.eq.s32.totalorder %s28, 0
    %p239 = por %p237, %p238
    %s240 = ssub.s32 %s22, %s29
    %p241 = scmp.eq.s32.totalorder %s240, 0
    %s243 = sadd.s32 %s242, 1
    %s244 = scalar_select %p241, %s242, %s243
    %p247 = pneg %p241
    %p248 = scmp.eq.s32.totalorder %s22, 3
    %p249 = por %p247, %p248
    %p250 = scmp.ne.s32.totalorder %s242, %s245
    %p251 = scmp.eq.s32.totalorder %s22, 0
    %p252 = por %p250, %p251
    %p253 = scmp.ne.s32.totalorder %s242, %s245
    %p254 = scmp.eq.s32.totalorder %s27, 3
    %p255 = por %p253, %p254
    %p256 = scmp.ne.s32.totalorder %s245, %s246
    %p257 = scmp.eq.s32.totalorder %s27, 0
    %p258 = por %p256, %p257
    %p259 = scmp.ne.s32.totalorder %s245, %s246
    %p260 = scmp.eq.s32.totalorder %s28, 3
    %p261 = por %p259, %p260
    %p263 = scmp.ne.s32.totalorder %s246, %s262
    %p264 = scmp.eq.s32.totalorder %s28, 0
    %p265 = por %p263, %p264
    %s266 = ssub.s32 %s22, %s29
    %p267 = scmp.eq.s32.totalorder %s266, 0
    %s269 = sadd.s32 %s268, 1
    %s270 = scalar_select %p267, %s268, %s269
    %p273 = pneg %p267
    %p274 = scmp.eq.s32.totalorder %s22, 3
    %p275 = por %p273, %p274
    %p276 = scmp.ne.s32.totalorder %s268, %s271
    %p277 = scmp.eq.s32.totalorder %s22, 0
    %p278 = por %p276, %p277
    %p279 = scmp.ne.s32.totalorder %s268, %s271
    %p280 = scmp.eq.s32.totalorder %s27, 3
    %p281 = por %p279, %p280
    %p282 = scmp.ne.s32.totalorder %s271, %s272
    %p283 = scmp.eq.s32.totalorder %s27, 0
    %p284 = por %p282, %p283
    %p285 = scmp.ne.s32.totalorder %s271, %s272
    %p286 = scmp.eq.s32.totalorder %s28, 3
    %p287 = por %p285, %p286
    %p289 = scmp.ne.s32.totalorder %s272, %s288
    %p290 = scmp.eq.s32.totalorder %s28, 0
    %p291 = por %p289, %p290
    %s292 = ssub.s32 %s22, %s29
    %p293 = scmp.eq.s32.totalorder %s292, 0
    %s295 = sadd.s32 %s294, 1
    %s296 = scalar_select %p293, %s294, %s295
    %p299 = pneg %p293
    %p300 = scmp.eq.s32.totalorder %s22, 3
    %p301 = por %p299, %p300
    %p302 = scmp.ne.s32.totalorder %s294, %s297
    %p303 = scmp.eq.s32.totalorder %s22, 0
    %p304 = por %p302, %p303
    %p305 = scmp.ne.s32.totalorder %s294, %s297
    %p306 = scmp.eq.s32.totalorder %s27, 3
    %p307 = por %p305, %p306
    %p308 = scmp.ne.s32.totalorder %s297, %s298
    %p309 = scmp.eq.s32.totalorder %s27, 0
    %p310 = por %p308, %p309
    %p311 = scmp.ne.s32.totalorder %s297, %s298
    %p312 = scmp.eq.s32.totalorder %s28, 3
    %p313 = por %p311, %p312
    %p315 = scmp.ne.s32.totalorder %s298, %s314
    %p316 = scmp.eq.s32.totalorder %s28, 0
    %p317 = por %p315, %p316
    %s318 = ssub.s32 %s22, %s29
    %p319 = scmp.eq.s32.totalorder %s318, 0
    %s321 = sadd.s32 %s320, 1
    %s322 = scalar_select %p319, %s320, %s321
    %p325 = pneg %p319
    %p326 = scmp.eq.s32.totalorder %s22, 3
    %p327 = por %p325, %p326
    %p328 = scmp.ne.s32.totalorder %s320, %s323
    %p329 = scmp.eq.s32.totalorder %s22, 0
    %p330 = por %p328, %p329
    %p331 = scmp.ne.s32.totalorder %s320, %s323
    %p332 = scmp.eq.s32.totalorder %s27, 3
    %p333 = por %p331, %p332
    %p334 = scmp.ne.s32.totalorder %s323, %s324
    %p335 = scmp.eq.s32.totalorder %s27, 0
    %p336 = por %p334, %p335
    %p337 = scmp.ne.s32.totalorder %s323, %s324
    %p338 = scmp.eq.s32.totalorder %s28, 3
    %p339 = por %p337, %p338
    %p341 = scmp.ne.s32.totalorder %s324, %s340
    %p342 = scmp.eq.s32.totalorder %s28, 0
    %p343 = por %p341, %p342
    %s344 = ssub.s32 %s22, %s29
    %p345 = scmp.eq.s32.totalorder %s344, 0
    %s347 = sadd.s32 %s346, 1
    %s348 = scalar_select %p345, %s346, %s347
    %p351 = pneg %p345
    %p352 = scmp.eq.s32.totalorder %s22, 3
    %p353 = por %p351, %p352
    %p354 = scmp.ne.s32.totalorder %s346, %s349
    %p355 = scmp.eq.s32.totalorder %s22, 0
    %p356 = por %p354, %p355
    %p357 = scmp.ne.s32.totalorder %s346, %s349
    %p358 = scmp.eq.s32.totalorder %s27, 3
    %p359 = por %p357, %p358
    %p360 = scmp.ne.s32.totalorder %s349, %s350
    %p361 = scmp.eq.s32.totalorder %s27, 0
    %p362 = por %p360, %p361
    %p363 = scmp.ne.s32.totalorder %s349, %s350
    %p364 = scmp.eq.s32.totalorder %s28, 3
    %p365 = por %p363, %p364
    %p367 = scmp.ne.s32.totalorder %s350, %s366
    %p368 = scmp.eq.s32.totalorder %s28, 0
    %p369 = por %p367, %p368
    %s371 = sadd.s32 %s370, 1
    %p374 = scmp.eq.s32.totalorder %s22, 3
    %p375 = scmp.ne.s32.totalorder %s370, %s372
    %p376 = scmp.eq.s32.totalorder %s22, 0
    %p377 = por %p375, %p376
    %p378 = scmp.ne.s32.totalorder %s370, %s372
    %p379 = scmp.eq.s32.totalorder %s27, 3
    %p380 = por %p378, %p379
    %p381 = scmp.ne.s32.totalorder %s372, %s373
    %p382 = scmp.eq.s32.totalorder %s27, 0
    %p383 = por %p381, %p382
    %p384 = scmp.ne.s32.totalorder %s372, %s373
    %p385 = scmp.eq.s32.totalorder %s28, 3
    %p386 = por %p384, %p385
    %p388 = scmp.ne.s32.totalorder %s373, %s387
    %p389 = scmp.eq.s32.totalorder %s28, 0
    %p390 = por %p388, %p389
    %s392 = sadd.s32 %s391, 1
    %p395 = scmp.eq.s32.totalorder %s22, 3
    %p396 = scmp.ne.s32.totalorder %s391, %s393
    %p397 = scmp.eq.s32.totalorder %s22, 0
    %p398 = por %p396, %p397
    %p399 = scmp.ne.s32.totalorder %s391, %s393
    %p400 = scmp.eq.s32.totalorder %s27, 3
    %p401 = por %p399, %p400
    %p402 = scmp.ne.s32.totalorder %s393, %s394
    %p403 = scmp.eq.s32.totalorder %s27, 0
    %p404 = por %p402, %p403
    %p405 = scmp.ne.s32.totalorder %s393, %s394
    %p406 = scmp.eq.s32.totalorder %s28, 3
    %p407 = por %p405, %p406
    %p409 = scmp.ne.s32.totalorder %s394, %s408
    %p410 = scmp.eq.s32.totalorder %s28, 0
    %p411 = por %p409, %p410
    %p412 = scmp.le.s32.totalorder 1, %s22
    %p413 = scmp.lt.s32.totalorder %s22, 5
    %p414 = pnand %p412, %p413
    %p415 = pneg %p414
    // Predicated region
    $region9: #{embedding_net_forward.1} parent=5 // pred_check
      _
    $region10: #{embedding_net_forward.1} parent=5 // pred_check_branch
      %417 = sbr.rel (%p414) target = $region12
    $region11: #{embedding_net_forward.1} parent=5 // pred_region
      %s418 = ssub.s32 %s22, 1
      // Predicated region
      $region13: #{embedding_net_forward.1} parent=11 // pred_check
        %p419 = pneg %p43
      $region14: #{embedding_net_forward.1} parent=11 // pred_check_branch
        %421 = sbr.rel (%p419) target = $region16
      $region15: #{embedding_net_forward.1} parent=11 // pred_region
        _
      $region16: #{embedding_net_forward.1} parent=11 // pred_fallthru
        _
      // Predicated region
      $region17: #{embedding_net_forward.1} parent=11 // pred_check
        %p422 = pneg %p64
      $region18: #{embedding_net_forward.1} parent=11 // pred_check_branch
        %424 = sbr.rel (%p422) target = $region20
      $region19: #{embedding_net_forward.1} parent=11 // pred_region
        _
      $region20: #{embedding_net_forward.1} parent=11 // pred_fallthru
        _
      // Predicated region
      $region21: #{embedding_net_forward.1} parent=11 // pred_check
        %p425 = pneg %p85
      $region22: #{embedding_net_forward.1} parent=11 // pred_check_branch
        %427 = sbr.rel (%p425) target = $region24
      $region23: #{embedding_net_forward.1} parent=11 // pred_region
        _
      $region24: #{embedding_net_forward.1} parent=11 // pred_fallthru
        _
      // Predicated region
      $region25: #{embedding_net_forward.1} parent=11 // pred_check
        %p428 = pneg %p106
      $region26: #{embedding_net_forward.1} parent=11 // pred_check_branch
        %430 = sbr.rel (%p428) target = $region28
      $region27: #{embedding_net_forward.1} parent=11 // pred_region
        _
      $region28: #{embedding_net_forward.1} parent=11 // pred_fallthru
        _
      // Predicated region
      $region29: #{embedding_net_forward.1} parent=11 // pred_check
        %p431 = pneg %p127
      $region30: #{embedding_net_forward.1} parent=11 // pred_check_branch
        %433 = sbr.rel (%p431) target = $region32
      $region31: #{embedding_net_forward.1} parent=11 // pred_region
        _
      $region32: #{embedding_net_forward.1} parent=11 // pred_fallthru
        _
      // Predicated region
      $region33: #{embedding_net_forward.1} parent=11 // pred_check
        %p434 = pneg %p148
      $region34: #{embedding_net_forward.1} parent=11 // pred_check_branch
        %436 = sbr.rel (%p434) target = $region36
      $region35: #{embedding_net_forward.1} parent=11 // pred_region
        _
      $region36: #{embedding_net_forward.1} parent=11 // pred_fallthru
        _
      // Predicated region
      $region37: #{embedding_net_forward.1} parent=11 // pred_check
        %p437 = pneg %p169
      $region38: #{embedding_net_forward.1} parent=11 // pred_check_branch
        %439 = sbr.rel (%p437) target = $region40
      $region39: #{embedding_net_forward.1} parent=11 // pred_region
        _
      $region40: #{embedding_net_forward.1} parent=11 // pred_fallthru
        _
      // Predicated region
      $region41: #{embedding_net_forward.1} parent=11 // pred_check
        %p440 = pneg %p190
      $region42: #{embedding_net_forward.1} parent=11 // pred_check_branch
        %442 = sbr.rel (%p440) target = $region44
      $region43: #{embedding_net_forward.1} parent=11 // pred_region
        _
      $region44: #{embedding_net_forward.1} parent=11 // pred_fallthru
        _
      // Predicated region
      $region45: #{embedding_net_forward.1} parent=11 // pred_check
        %p443 = pneg %p211
      $region46: #{embedding_net_forward.1} parent=11 // pred_check_branch
        %445 = sbr.rel (%p443) target = $region48
      $region47: #{embedding_net_forward.1} parent=11 // pred_region
        _
      $region48: #{embedding_net_forward.1} parent=11 // pred_fallthru
        _
      // Predicated region
      $region49: #{embedding_net_forward.1} parent=11 // pred_check
        %p446 = pneg %p232
      $region50: #{embedding_net_forward.1} parent=11 // pred_check_branch
        %448 = sbr.rel (%p446) target = $region52
      $region51: #{embedding_net_forward.1} parent=11 // pred_region
        _
      $region52: #{embedding_net_forward.1} parent=11 // pred_fallthru
        _
      // Predicated region
      $region53: #{embedding_net_forward.1} parent=11 // pred_check
        %p449 = pneg %p383
      $region54: #{embedding_net_forward.1} parent=11 // pred_check_branch
        %451 = sbr.rel (%p449) target = $region56
      $region55: #{embedding_net_forward.1} parent=11 // pred_region
        _
      $region56: #{embedding_net_forward.1} parent=11 // pred_fallthru
        _
    $region12: #{embedding_net_forward.1} parent=5 // pred_fallthru
      _
    %p452 = scmp.lt.s32.totalorder %s22, 4
    // Predicated region
    $region57: #{embedding_net_forward.1} parent=5 // pred_check
      %p453 = pneg %p452
    $region58: #{embedding_net_forward.1} parent=5 // pred_check_branch
      %455 = sbr.rel (%p453) target = $region60
    $region59: #{embedding_net_forward.1} parent=5 // pred_region
      // Predicated region
      $region61: #{embedding_net_forward.1} parent=59 // pred_check
        %p456 = pneg %p252
      $region62: #{embedding_net_forward.1} parent=59 // pred_check_branch
        %458 = sbr.rel (%p456) target = $region64
      $region63: #{embedding_net_forward.1} parent=59 // pred_region
        %p459 = scmp.lt.s32.totalorder %s22, 3
        %s460 = scalar_select %p459, %s22, 3
        %s461 = smul.addr %s460, 48
        %s462 = smul.addr %s461, 4
        %s463 = scalar_lea.vmem %s10, %s462
      $region64: #{embedding_net_forward.1} parent=59 // pred_fallthru
        _
      // Predicated region
      $region65: #{embedding_net_forward.1} parent=59 // pred_check
        %p464 = pneg %p278
      $region66: #{embedding_net_forward.1} parent=59 // pred_check_branch
        %466 = sbr.rel (%p464) target = $region68
      $region67: #{embedding_net_forward.1} parent=59 // pred_region
        %p467 = scmp.lt.s32.totalorder %s22, 3
        %s468 = scalar_select %p467, %s22, 3
        %s469 = smul.addr %s468, 4
        %s470 = scalar_lea.vmem %s11, %s469
      $region68: #{embedding_net_forward.1} parent=59 // pred_fallthru
        _
      // Predicated region
      $region69: #{embedding_net_forward.1} parent=59 // pred_check
        %p471 = pneg %p304
      $region70: #{embedding_net_forward.1} parent=59 // pred_check_branch
        %473 = sbr.rel (%p471) target = $region72
      $region71: #{embedding_net_forward.1} parent=59 // pred_region
        %p474 = scmp.lt.s32.totalorder %s22, 3
        %s475 = scalar_select %p474, %s22, 3
        %s476 = smul.addr %s475, 64
        %s477 = smul.addr %s476, 4
        %s478 = scalar_lea.vmem %s12, %s477
      $region72: #{embedding_net_forward.1} parent=59 // pred_fallthru
        _
      // Predicated region
      $region73: #{embedding_net_forward.1} parent=59 // pred_check
        %p479 = pneg %p330
      $region74: #{embedding_net_forward.1} parent=59 // pred_check_branch
        %481 = sbr.rel (%p479) target = $region76
      $region75: #{embedding_net_forward.1} parent=59 // pred_region
        %p482 = scmp.lt.s32.totalorder %s22, 3
        %s483 = scalar_select %p482, %s22, 3
        %s484 = scalar_lea.vmem %s13, %s483
      $region76: #{embedding_net_forward.1} parent=59 // pred_fallthru
        _
      // Predicated region
      $region77: #{embedding_net_forward.1} parent=59 // pred_check
        %p485 = pneg %p356
      $region78: #{embedding_net_forward.1} parent=59 // pred_check_branch
        %487 = sbr.rel (%p485) target = $region80
      $region79: #{embedding_net_forward.1} parent=59 // pred_region
        %p488 = scmp.lt.s32.totalorder %s22, 3
        %s489 = scalar_select %p488, %s22, 3
        %s490 = scalar_lea.vmem %s14, %s489
      $region80: #{embedding_net_forward.1} parent=59 // pred_fallthru
        _
    $region60: #{embedding_net_forward.1} parent=5 // pred_fallthru
      _
    %p491 = scmp.le.s32.totalorder 1, %s22
    %p492 = scmp.lt.s32.totalorder %s22, 5
    %p493 = pnand %p491, %p492
    %p494 = pneg %p493
    // Predicated region
    $region81: #{embedding_net_forward.1} parent=5 // pred_check
      _
    $region82: #{embedding_net_forward.1} parent=5 // pred_check_branch
      %496 = sbr.rel (%p493) target = $region84
    $region83: #{embedding_net_forward.1} parent=5 // pred_region
      %s497 = ssub.s32 %s22, 1
      %p498 = pneg %p43
      %p499 = pneg %p40
      %p500 = pneg %p64
      %p501 = pneg %p61
      %p502 = pneg %p85
      %p503 = pneg %p82
      %p504 = pneg %p106
      %p505 = pneg %p103
      %p506 = pneg %p127
      %p507 = pneg %p124
      %p508 = pneg %p148
      %p509 = pneg %p145
      %p510 = pneg %p169
      %p511 = pneg %p166
      %p512 = pneg %p190
      %p513 = pneg %p187
      %p514 = pneg %p211
      %p515 = pneg %p208
      %p516 = pneg %p232
      %p517 = pneg %p229
      %p518 = scmp.lt.s32.totalorder %s27, 3
      %s519 = scalar_select %p518, %s27, 3
      %s520 = smul.addr %s519, 48
      %s521 = smul.addr %s520, 4
      %s522 = scalar_lea.vmem %s10, %s521
      %p523 = pneg %p258
      %p524 = pneg %p255
      %p525 = scmp.lt.s32.totalorder %s27, 3
      %s526 = scalar_select %p525, %s27, 3
      %s527 = smul.addr %s526, 4
      %s528 = scalar_lea.vmem %s11, %s527
      %p529 = pneg %p284
      %p530 = pneg %p281
      %p531 = scmp.lt.s32.totalorder %s27, 3
      %s532 = scalar_select %p531, %s27, 3
      %s533 = smul.addr %s532, 64
      %s534 = smul.addr %s533, 4
      %s535 = scalar_lea.vmem %s12, %s534
      %p536 = pneg %p310
      %p537 = pneg %p307
      %p538 = scmp.lt.s32.totalorder %s27, 3
      %s539 = scalar_select %p538, %s27, 3
      %s540 = scalar_lea.vmem %s13, %s539
      %p541 = pneg %p336
      %p542 = pneg %p333
      %p543 = scmp.lt.s32.totalorder %s27, 3
      %s544 = scalar_select %p543, %s27, 3
      %s545 = scalar_lea.vmem %s14, %s544
      %p546 = pneg %p362
      %p547 = pneg %p359
      %p548 = pneg %p383
      %p549 = pneg %p380
      %p550 = pneg %p404
      %p551 = pneg %p401
      %p552 = scmp.lt.s32.totalorder %s27, 3
      %s553 = scalar_select %p552, %s27, 3
      %s554 = smul.addr %s553, 48
      %s555 = smul.addr %s554, 4
      %s556 = scalar_lea.vmem %s10, %s555
      %p557 = scmp.lt.s32.totalorder %s27, 3
      %s558 = scalar_select %p557, %s27, 3
      %s559 = smul.addr %s558, 4
      %s560 = scalar_lea.vmem %s11, %s559
      %p561 = scmp.lt.s32.totalorder %s27, 3
      %s562 = scalar_select %p561, %s27, 3
      %s563 = smul.addr %s562, 64
      %s564 = smul.addr %s563, 4
      %s565 = scalar_lea.vmem %s12, %s564
      %p566 = scmp.lt.s32.totalorder %s27, 3
      %s567 = scalar_select %p566, %s27, 3
      %s568 = scalar_lea.vmem %s13, %s567
      %p569 = scmp.lt.s32.totalorder %s27, 3
      %s570 = scalar_select %p569, %s27, 3
      %s571 = scalar_lea.vmem %s14, %s570
      %p573 = scmp.eq.s32.totalorder %s27, 0
      // Predicated region
      $region85: #{embedding_net_forward.1} parent=83 // pred_check
        %p574 = pneg %p573
      $region86: #{embedding_net_forward.1} parent=83 // pred_check_branch
        %576 = sbr.rel (%p574) target = $region88
      $region87: #{embedding_net_forward.1} parent=83 // pred_region
        %v577 = vld [vmem:[%s1] sm:$0xff]
        %v578 = vld [vmem:[%s4] sm:$0xff]
        %v579 = vld [vmem:[%s4 + $0x8] sm:$0xff]
        %v580 = vld [vmem:[%s5] sm:$0x1]
        %v582 = vperm.slane %v580, 0
        %vm584 = vcmask 130048
        %v586 = vsel %vm584, %v577, 0
        %588 = vmatpush.msra.mxu0 0.0
        %589 = vmatpush.msra.mxu0 0.0
        %590 = vmatpush.msra.mxu0 0.0
        %591 = vmatpush.msra.mxu0 0.0
        %592 = vmatpush.msra.mxu0 0.0
        %593 = vmatpush.msra.mxu0 0.0
        %594 = vmatpush.msra.mxu0 0.0
        %595 = vmatpush.msra.mxu0 0.0
        %596 = vmatpush.msra.mxu0 0.0
        %597 = vmatpush.msra.mxu0 0.0
        %598 = vmatpush.msra.mxu0 0.0
        %599 = vmatpush.msra.mxu0 0.0
        %600 = vmatpush.msra.mxu0 0.0
        %601 = vmatpush.msra.mxu0 0.0
        %602 = vmatpush.msra.mxu0 %v579
        %603 = vmatpush.msra.mxu0 %v578
        %604 = vmatmul.f32.gmra.mxu0 %v586
        %v605 = vpop.f32.mrf.mxu0
        %v606 = vadd.f32 %v582, %v605
        %607 = vdwg.mxu0
        %v608 = vld [vmem:[%s2] sm:$0xff]
        %v609 = vld [vmem:[%s6] sm:$0xff]
        %v610 = vld [vmem:[%s6 + $0x8] sm:$0xff]
        %v611 = vld [vmem:[%s6 + $0x10] sm:$0xff]
        %v612 = vld [vmem:[%s7] sm:$0x1]
        %v614 = vperm.slane %v612, 0
        %vm616 = vcmask 195584
        %v618 = vsel %vm616, %v608, 0
        %620 = vmatpush.msra.mxu0 0.0
        %621 = vmatpush.msra.mxu0 0.0
        %622 = vmatpush.msra.mxu0 0.0
        %623 = vmatpush.msra.mxu0 0.0
        %624 = vmatpush.msra.mxu0 0.0
        %625 = vmatpush.msra.mxu0 0.0
        %626 = vmatpush.msra.mxu0 0.0
        %627 = vmatpush.msra.mxu0 0.0
        %628 = vmatpush.msra.mxu0 0.0
        %629 = vmatpush.msra.mxu0 0.0
        %630 = vmatpush.msra.mxu0 0.0
        %631 = vmatpush.msra.mxu0 0.0
        %632 = vmatpush.msra.mxu0 0.0
        %633 = vmatpush.msra.mxu0 %v611
        %634 = vmatpush.msra.mxu0 %v610
        %635 = vmatpush.msra.mxu0 %v609
        %636 = vmatmul.f32.gmra.mxu0 %v618
        %v637 = vpop.f32.mrf.mxu0
        %v638 = vadd.f32 %v614, %v637
        %639 = vdwg.mxu0
        %v640 = vld [vmem:[%s3] sm:$0xff]
        %v641 = vld [vmem:[%s8] sm:$0xff]
        %v642 = vld [vmem:[%s8 + $0x8] sm:$0xff]
        %v643 = vld [vmem:[%s8 + $0x10] sm:$0xf]
        %v644 = vld [vmem:[%s9] sm:$0x1]
        %v646 = vperm.slane %v644, 0
        %vm648 = vcmask 162816
        %v650 = vsel %vm648, %v640, 0
        %vm652 = vcmask 1043456
        %v654 = vsel %vm652, %v643, 0
        %656 = vmatpush.msra.mxu0 0.0
        %657 = vmatpush.msra.mxu0 0.0
        %658 = vmatpush.msra.mxu0 0.0
        %659 = vmatpush.msra.mxu0 0.0
        %660 = vmatpush.msra.mxu0 0.0
        %661 = vmatpush.msra.mxu0 0.0
        %662 = vmatpush.msra.mxu0 0.0
        %663 = vmatpush.msra.mxu0 0.0
        %664 = vmatpush.msra.mxu0 0.0
        %665 = vmatpush.msra.mxu0 0.0
        %666 = vmatpush.msra.mxu0 0.0
        %667 = vmatpush.msra.mxu0 0.0
        %668 = vmatpush.msra.mxu0 0.0
        %669 = vmatpush.msra.mxu0 %v654
        %670 = vmatpush.msra.mxu0 %v642
        %671 = vmatpush.msra.mxu0 %v641
        %672 = vmatmul.f32.gmra.mxu0 %v650
        %v673 = vpop.f32.mrf.mxu0
        %v674 = vadd.f32 %v646, %v673
        %675 = vdwg.mxu0
        %677 = vrot.lane.b32.xlu0 %v638, 32
        %v678 = vpop.permute.xlu0 %677
        %681 = vrot.lane.b32.xlu0 %v674, 64
        %v682 = vpop.permute.xlu0 %681
        %vm684 = vcmask 261120
        %v685 = vsel %vm684, %v606, %v678
        %vm686 = vcmask 523264
        %v687 = vsel %vm686, %v685, %v682
        %v688 = vpack.c.bf16 %v687, %v687
        %vm689 = vcmask 781312
        %690 = vst.msk [vmem:[#allocation2] sm:$0xf] %vm689, %v688
        %vm691 = vcmask 7168
        %692 = vst.msk [vmem:[#allocation3] sm:$0xff] %vm691, 0.0
      $region88: #{embedding_net_forward.1} parent=83 // pred_fallthru
        _
      %v693 = vld [vmem:[#allocation2] sm:$0xf]
      %v694 = vld [vmem:[%s556] sm:$0xff]
      %v695 = vld [vmem:[%s556 + $0x8] sm:$0xff]
      %v696 = vld [vmem:[%s556 + $0x10] sm:$0xff]
      %v697 = vld [vmem:[%s556 + $0x18] sm:$0xff]
      %v698 = vld [vmem:[%s556 + $0x20] sm:$0xff]
      %v699 = vld [vmem:[%s556 + $0x28] sm:$0xff]
      %v700 = vld [vmem:[%s556 + $0x30] sm:$0xff]
      %v701 = vld [vmem:[%s556 + $0x38] sm:$0xff]
      %v702 = vld [vmem:[%s556 + $0x40] sm:$0xff]
      %v703 = vld [vmem:[%s556 + $0x48] sm:$0xff]
      %v704 = vld [vmem:[%s556 + $0x50] sm:$0xff]
      %v705 = vld [vmem:[%s556 + $0x58] sm:$0xff]
      %v706 = vld [vmem:[%s556 + $0x60] sm:$0xff]
      %v707 = vld [vmem:[%s556 + $0x68] sm:$0xff]
      %v708 = vld [vmem:[%s556 + $0x70] sm:$0xff]
      %v709 = vld [vmem:[%s556 + $0x78] sm:$0xff]
      %v710 = vld [vmem:[%s556 + $0x80] sm:$0xff]
      %v711 = vld [vmem:[%s556 + $0x88] sm:$0xff]
      %v712 = vld [vmem:[%s556 + $0x90] sm:$0xff]
      %v713 = vld [vmem:[%s556 + $0x98] sm:$0xff]
      %v714 = vld [vmem:[%s556 + $0xa0] sm:$0xff]
      %v715 = vld [vmem:[%s556 + $0xa8] sm:$0xff]
      %v716 = vld [vmem:[%s556 + $0xb0] sm:$0xff]
      %v717 = vld [vmem:[%s556 + $0xb8] sm:$0xff]
      %v718 = vld [vmem:[%s560] sm:$0xf]
      %v720 = vperm.slane %v718, 0
      %v721 = vperm.slane %v718, 1
      %v722 = vperm.slane %v718, 2
      %v723 = vperm.slane %v718, 3
      %v752 = vunpack.c.l.b16 %v694
      %v753 = vunpack.c.h.b16 %v694
      %v754 = vunpack.c.l.b16 %v695
      %v755 = vunpack.c.h.b16 %v695
      %v756 = vunpack.c.l.b16 %v696
      %v757 = vunpack.c.h.b16 %v696
      %v758 = vunpack.c.l.b16 %v697
      %v759 = vunpack.c.h.b16 %v697
      %v760 = vunpack.c.l.b16 %v698
      %v761 = vunpack.c.h.b16 %v698
      %v762 = vunpack.c.l.b16 %v699
      %v763 = vunpack.c.h.b16 %v699
      %v764 = vunpack.c.l.b16 %v700
      %v765 = vunpack.c.h.b16 %v700
      %v766 = vunpack.c.l.b16 %v701
      %v767 = vunpack.c.h.b16 %v701
      %v768 = vunpack.c.l.b16 %v702
      %v769 = vunpack.c.h.b16 %v702
      %v770 = vunpack.c.l.b16 %v703
      %v771 = vunpack.c.h.b16 %v703
      %v772 = vunpack.c.l.b16 %v704
      %v773 = vunpack.c.h.b16 %v704
      %v774 = vunpack.c.l.b16 %v705
      %v775 = vunpack.c.h.b16 %v705
      %v776 = vunpack.c.l.b16 %v706
      %v777 = vunpack.c.h.b16 %v706
      %v778 = vunpack.c.l.b16 %v707
      %v779 = vunpack.c.h.b16 %v707
      %v780 = vunpack.c.l.b16 %v708
      %v781 = vunpack.c.h.b16 %v708
      %v782 = vunpack.c.l.b16 %v709
      %v783 = vunpack.c.h.b16 %v709
      %v784 = vunpack.c.l.b16 %v710
      %v785 = vunpack.c.h.b16 %v710
      %v786 = vunpack.c.l.b16 %v711
      %v787 = vunpack.c.h.b16 %v711
      %v788 = vunpack.c.l.b16 %v712
      %v789 = vunpack.c.h.b16 %v712
      %v790 = vunpack.c.l.b16 %v713
      %v791 = vunpack.c.h.b16 %v713
      %v792 = vunpack.c.l.b16 %v714
      %v793 = vunpack.c.h.b16 %v714
      %v794 = vunpack.c.l.b16 %v715
      %v795 = vunpack.c.h.b16 %v715
      %v796 = vunpack.c.l.b16 %v716
      %v797 = vunpack.c.h.b16 %v716
      %v798 = vunpack.c.l.b16 %v717
      %v799 = vunpack.c.h.b16 %v717
      %v800 = vpack.c.b16 %v756, %v752
      %v801 = vpack.c.b16 %v757, %v753
      %v802 = vpack.c.b16 %v758, %v754
      %v803 = vpack.c.b16 %v759, %v755
      %v804 = vpack.c.b16 %v764, %v760
      %v805 = vpack.c.b16 %v765, %v761
      %v806 = vpack.c.b16 %v766, %v762
      %v807 = vpack.c.b16 %v767, %v763
      %v808 = vpack.c.b16 %v772, %v768
      %v809 = vpack.c.b16 %v773, %v769
      %v810 = vpack.c.b16 %v774, %v770
      %v811 = vpack.c.b16 %v775, %v771
      %v812 = vpack.c.b16 %v780, %v776
      %v813 = vpack.c.b16 %v781, %v777
      %v814 = vpack.c.b16 %v782, %v778
      %v815 = vpack.c.b16 %v783, %v779
      %v816 = vpack.c.b16 %v788, %v784
      %v817 = vpack.c.b16 %v789, %v785
      %v818 = vpack.c.b16 %v790, %v786
      %v819 = vpack.c.b16 %v791, %v787
      %v820 = vpack.c.b16 %v796, %v792
      %v821 = vpack.c.b16 %v797, %v793
      %v822 = vpack.c.b16 %v798, %v794
      %v823 = vpack.c.b16 %v799, %v795
      %vm848 = vcmask 785408
      %v850 = vsel %vm848, %v693, 0
      %852 = vmatpush.bf16.msra.mxu0 0
      %853 = vmatpush.bf16.msra.mxu0 0
      %854 = vmatpush.bf16.msra.mxu0 %v820
      %855 = vmatpush.bf16.msra.mxu0 %v816
      %856 = vmatpush.bf16.msra.mxu0 %v812
      %857 = vmatpush.bf16.msra.mxu0 %v808
      %858 = vmatpush.bf16.msra.mxu0 %v804
      %859 = vmatpush.bf16.msra.mxu0 %v800
      %860 = vmatmul.bf16.gmra.mxu0 %v850
      %v861 = vpop.f32.mrf.mxu0
      %v862 = vadd.f32 %v720, %v861
      %v863 = vpop.f32.mrf.mxu0
      %864 = vdwg.mxu0
      %865 = vmatpush.bf16.msra.mxu0 0
      %866 = vmatpush.bf16.msra.mxu0 0
      %867 = vmatpush.bf16.msra.mxu0 %v821
      %868 = vmatpush.bf16.msra.mxu0 %v817
      %869 = vmatpush.bf16.msra.mxu0 %v813
      %870 = vmatpush.bf16.msra.mxu0 %v809
      %871 = vmatpush.bf16.msra.mxu0 %v805
      %872 = vmatpush.bf16.msra.mxu0 %v801
      %873 = vmatmul.bf16.gmra.mxu0 %v850
      %v874 = vpop.f32.mrf.mxu0
      %v875 = vadd.f32 %v721, %v874
      %v876 = vpop.f32.mrf.mxu0
      %877 = vdwg.mxu0
      %878 = vmatpush.bf16.msra.mxu0 0
      %879 = vmatpush.bf16.msra.mxu0 0
      %880 = vmatpush.bf16.msra.mxu0 %v822
      %881 = vmatpush.bf16.msra.mxu0 %v818
      %882 = vmatpush.bf16.msra.mxu0 %v814
      %883 = vmatpush.bf16.msra.mxu0 %v810
      %884 = vmatpush.bf16.msra.mxu0 %v806
      %885 = vmatpush.bf16.msra.mxu0 %v802
      %886 = vmatmul.bf16.gmra.mxu0 %v850
      %v887 = vpop.f32.mrf.mxu0
      %v888 = vadd.f32 %v722, %v887
      %v889 = vpop.f32.mrf.mxu0
      %890 = vdwg.mxu0
      %891 = vmatpush.bf16.msra.mxu0 0
      %892 = vmatpush.bf16.msra.mxu0 0
      %893 = vmatpush.bf16.msra.mxu0 %v823
      %894 = vmatpush.bf16.msra.mxu0 %v819
      %895 = vmatpush.bf16.msra.mxu0 %v815
      %896 = vmatpush.bf16.msra.mxu0 %v811
      %897 = vmatpush.bf16.msra.mxu0 %v807
      %898 = vmatpush.bf16.msra.mxu0 %v803
      %899 = vmatmul.bf16.gmra.mxu0 %v850
      %v900 = vpop.f32.mrf.mxu0
      %v901 = vadd.f32 %v723, %v900
      %v902 = vpop.f32.mrf.mxu0
      %903 = vdwg.mxu0
      %v904 = vmax.f32 %v862, 0.0
      %v905 = vmax.f32 %v875, 0.0
      %v906 = vmax.f32 %v888, 0.0
      %v907 = vmax.f32 %v901, 0.0
      %v908 = vpack.c.bf16 %v904, %v904
      %v909 = vpack.c.bf16 %v905, %v905
      %v910 = vpack.c.bf16 %v906, %v906
      %v911 = vpack.c.bf16 %v907, %v907
      %v912 = vld [vmem:[%s565] sm:$0xf]
      %v913 = vld [vmem:[%s565 + $0x4] sm:$0xf]
      %v914 = vld [vmem:[%s565 + $0x8] sm:$0xf]
      %v915 = vld [vmem:[%s565 + $0xc] sm:$0xf]
      %v916 = vld [vmem:[%s565 + $0x10] sm:$0xf]
      %v917 = vld [vmem:[%s565 + $0x14] sm:$0xf]
      %v918 = vld [vmem:[%s565 + $0x18] sm:$0xf]
      %v919 = vld [vmem:[%s565 + $0x1c] sm:$0xf]
      %v920 = vld [vmem:[%s565 + $0x20] sm:$0xf]
      %v921 = vld [vmem:[%s565 + $0x24] sm:$0xf]
      %v922 = vld [vmem:[%s565 + $0x28] sm:$0xf]
      %v923 = vld [vmem:[%s565 + $0x2c] sm:$0xf]
      %v924 = vld [vmem:[%s565 + $0x30] sm:$0xf]
      %v925 = vld [vmem:[%s565 + $0x34] sm:$0xf]
      %v926 = vld [vmem:[%s565 + $0x38] sm:$0xf]
      %v927 = vld [vmem:[%s565 + $0x3c] sm:$0xf]
      %v928 = vld [vmem:[%s565 + $0x40] sm:$0xf]
      %v929 = vld [vmem:[%s565 + $0x44] sm:$0xf]
      %v930 = vld [vmem:[%s565 + $0x48] sm:$0xf]
      %v931 = vld [vmem:[%s565 + $0x4c] sm:$0xf]
      %v932 = vld [vmem:[%s565 + $0x50] sm:$0xf]
      %v933 = vld [vmem:[%s565 + $0x54] sm:$0xf]
      %v934 = vld [vmem:[%s565 + $0x58] sm:$0xf]
      %v935 = vld [vmem:[%s565 + $0x5c] sm:$0xf]
      %v936 = vld [vmem:[%s565 + $0x60] sm:$0xf]
      %v937 = vld [vmem:[%s565 + $0x64] sm:$0xf]
      %v938 = vld [vmem:[%s565 + $0x68] sm:$0xf]
      %v939 = vld [vmem:[%s565 + $0x6c] sm:$0xf]
      %v940 = vld [vmem:[%s565 + $0x70] sm:$0xf]
      %v941 = vld [vmem:[%s565 + $0x74] sm:$0xf]
      %v942 = vld [vmem:[%s565 + $0x78] sm:$0xf]
      %v943 = vld [vmem:[%s565 + $0x7c] sm:$0xf]
      %v944 = vld [vmem:[%s565 + $0x80] sm:$0xf]
      %v945 = vld [vmem:[%s565 + $0x84] sm:$0xf]
      %v946 = vld [vmem:[%s565 + $0x88] sm:$0xf]
      %v947 = vld [vmem:[%s565 + $0x8c] sm:$0xf]
      %v948 = vld [vmem:[%s565 + $0x90] sm:$0xf]
      %v949 = vld [vmem:[%s565 + $0x94] sm:$0xf]
      %v950 = vld [vmem:[%s565 + $0x98] sm:$0xf]
      %v951 = vld [vmem:[%s565 + $0x9c] sm:$0xf]
      %v952 = vld [vmem:[%s565 + $0xa0] sm:$0xf]
      %v953 = vld [vmem:[%s565 + $0xa4] sm:$0xf]
      %v954 = vld [vmem:[%s565 + $0xa8] sm:$0xf]
      %v955 = vld [vmem:[%s565 + $0xac] sm:$0xf]
      %v956 = vld [vmem:[%s565 + $0xb0] sm:$0xf]
      %v957 = vld [vmem:[%s565 + $0xb4] sm:$0xf]
      %v958 = vld [vmem:[%s565 + $0xb8] sm:$0xf]
      %v959 = vld [vmem:[%s565 + $0xbc] sm:$0xf]
      %v960 = vld [vmem:[%s565 + $0xc0] sm:$0xf]
      %v961 = vld [vmem:[%s565 + $0xc4] sm:$0xf]
      %v962 = vld [vmem:[%s565 + $0xc8] sm:$0xf]
      %v963 = vld [vmem:[%s565 + $0xcc] sm:$0xf]
      %v964 = vld [vmem:[%s565 + $0xd0] sm:$0xf]
      %v965 = vld [vmem:[%s565 + $0xd4] sm:$0xf]
      %v966 = vld [vmem:[%s565 + $0xd8] sm:$0xf]
      %v967 = vld [vmem:[%s565 + $0xdc] sm:$0xf]
      %v968 = vld [vmem:[%s565 + $0xe0] sm:$0xf]
      %v969 = vld [vmem:[%s565 + $0xe4] sm:$0xf]
      %v970 = vld [vmem:[%s565 + $0xe8] sm:$0xf]
      %v971 = vld [vmem:[%s565 + $0xec] sm:$0xf]
      %v972 = vld [vmem:[%s565 + $0xf0] sm:$0xf]
      %v973 = vld [vmem:[%s565 + $0xf4] sm:$0xf]
      %v974 = vld [vmem:[%s565 + $0xf8] sm:$0xf]
      %v975 = vld [vmem:[%s565 + $0xfc] sm:$0xf]
      %v976 = vld [vmem:[%s568] sm:$0x1]
      %v978 = vperm.slane %v976, 0
      %v1044 = vunpack.c.l.b16 %v912
      %v1045 = vunpack.c.l.b16 %v913
      %v1046 = vunpack.c.l.b16 %v914
      %v1047 = vunpack.c.l.b16 %v915
      %v1048 = vunpack.c.l.b16 %v916
      %v1049 = vunpack.c.l.b16 %v917
      %v1050 = vunpack.c.l.b16 %v918
      %v1051 = vunpack.c.l.b16 %v919
      %v1052 = vunpack.c.l.b16 %v920
      %v1053 = vunpack.c.l.b16 %v921
      %v1054 = vunpack.c.l.b16 %v922
      %v1055 = vunpack.c.l.b16 %v923
      %v1056 = vunpack.c.l.b16 %v924
      %v1057 = vunpack.c.l.b16 %v925
      %v1058 = vunpack.c.l.b16 %v926
      %v1059 = vunpack.c.l.b16 %v927
      %v1060 = vunpack.c.l.b16 %v928
      %v1061 = vunpack.c.l.b16 %v929
      %v1062 = vunpack.c.l.b16 %v930
      %v1063 = vunpack.c.l.b16 %v931
      %v1064 = vunpack.c.l.b16 %v932
      %v1065 = vunpack.c.l.b16 %v933
      %v1066 = vunpack.c.l.b16 %v934
      %v1067 = vunpack.c.l.b16 %v935
      %v1068 = vunpack.c.l.b16 %v936
      %v1069 = vunpack.c.l.b16 %v937
      %v1070 = vunpack.c.l.b16 %v938
      %v1071 = vunpack.c.l.b16 %v939
      %v1072 = vunpack.c.l.b16 %v940
      %v1073 = vunpack.c.l.b16 %v941
      %v1074 = vunpack.c.l.b16 %v942
      %v1075 = vunpack.c.l.b16 %v943
      %v1076 = vunpack.c.l.b16 %v944
      %v1077 = vunpack.c.l.b16 %v945
      %v1078 = vunpack.c.l.b16 %v946
      %v1079 = vunpack.c.l.b16 %v947
      %v1080 = vunpack.c.l.b16 %v948
      %v1081 = vunpack.c.l.b16 %v949
      %v1082 = vunpack.c.l.b16 %v950
      %v1083 = vunpack.c.l.b16 %v951
      %v1084 = vunpack.c.l.b16 %v952
      %v1085 = vunpack.c.l.b16 %v953
      %v1086 = vunpack.c.l.b16 %v954
      %v1087 = vunpack.c.l.b16 %v955
      %v1088 = vunpack.c.l.b16 %v956
      %v1089 = vunpack.c.l.b16 %v957
      %v1090 = vunpack.c.l.b16 %v958
      %v1091 = vunpack.c.l.b16 %v959
      %v1092 = vunpack.c.l.b16 %v960
      %v1093 = vunpack.c.l.b16 %v961
      %v1094 = vunpack.c.l.b16 %v962
      %v1095 = vunpack.c.l.b16 %v963
      %v1096 = vunpack.c.l.b16 %v964
      %v1097 = vunpack.c.l.b16 %v965
      %v1098 = vunpack.c.l.b16 %v966
      %v1099 = vunpack.c.l.b16 %v967
      %v1100 = vunpack.c.l.b16 %v968
      %v1101 = vunpack.c.l.b16 %v969
      %v1102 = vunpack.c.l.b16 %v970
      %v1103 = vunpack.c.l.b16 %v971
      %v1104 = vunpack.c.l.b16 %v972
      %v1105 = vunpack.c.l.b16 %v973
      %v1106 = vunpack.c.l.b16 %v974
      %v1107 = vunpack.c.l.b16 %v975
      %v1108 = vpack.c.b16 %v1045, %v1044
      %v1109 = vpack.c.b16 %v1047, %v1046
      %v1110 = vpack.c.b16 %v1049, %v1048
      %v1111 = vpack.c.b16 %v1051, %v1050
      %v1112 = vpack.c.b16 %v1053, %v1052
      %v1113 = vpack.c.b16 %v1055, %v1054
      %v1114 = vpack.c.b16 %v1057, %v1056
      %v1115 = vpack.c.b16 %v1059, %v1058
      %v1116 = vpack.c.b16 %v1061, %v1060
      %v1117 = vpack.c.b16 %v1063, %v1062
      %v1118 = vpack.c.b16 %v1065, %v1064
      %v1119 = vpack.c.b16 %v1067, %v1066
      %v1120 = vpack.c.b16 %v1069, %v1068
      %v1121 = vpack.c.b16 %v1071, %v1070
      %v1122 = vpack.c.b16 %v1073, %v1072
      %v1123 = vpack.c.b16 %v1075, %v1074
      %v1124 = vpack.c.b16 %v1077, %v1076
      %v1125 = vpack.c.b16 %v1079, %v1078
      %v1126 = vpack.c.b16 %v1081, %v1080
      %v1127 = vpack.c.b16 %v1083, %v1082
      %v1128 = vpack.c.b16 %v1085, %v1084
      %v1129 = vpack.c.b16 %v1087, %v1086
      %v1130 = vpack.c.b16 %v1089, %v1088
      %v1131 = vpack.c.b16 %v1091, %v1090
      %v1132 = vpack.c.b16 %v1093, %v1092
      %v1133 = vpack.c.b16 %v1095, %v1094
      %v1134 = vpack.c.b16 %v1097, %v1096
      %v1135 = vpack.c.b16 %v1099, %v1098
      %v1136 = vpack.c.b16 %v1101, %v1100
      %v1137 = vpack.c.b16 %v1103, %v1102
      %v1138 = vpack.c.b16 %v1105, %v1104
      %v1139 = vpack.c.b16 %v1107, %v1106
      %1172 = vmatpush.bf16.msra.mxu0 %v1115
      %1173 = vmatpush.bf16.msra.mxu0 %v1114
      %1174 = vmatpush.bf16.msra.mxu0 %v1113
      %1175 = vmatpush.bf16.msra.mxu0 %v1112
      %1176 = vmatpush.bf16.msra.mxu0 %v1111
      %1177 = vmatpush.bf16.msra.mxu0 %v1110
      %1178 = vmatpush.bf16.msra.mxu0 %v1109
      %1179 = vmatpush.bf16.msra.mxu0 %v1108
      %1180 = vmatmul.bf16.gmra.mxu0 %v908
      %v1181 = vpop.f32.mrf.mxu0
      %v1182 = vadd.f32 %v978, %v1181
      %v1183 = vpop.f32.mrf.mxu0
      %1184 = vdwg.mxu0
      %1185 = vmatpush.bf16.msra.mxu0 %v1123
      %1186 = vmatpush.bf16.msra.mxu0 %v1122
      %1187 = vmatpush.bf16.msra.mxu0 %v1121
      %1188 = vmatpush.bf16.msra.mxu0 %v1120
      %1189 = vmatpush.bf16.msra.mxu0 %v1119
      %1190 = vmatpush.bf16.msra.mxu0 %v1118
      %1191 = vmatpush.bf16.msra.mxu0 %v1117
      %1192 = vmatpush.bf16.msra.mxu0 %v1116
      %1193 = vmatmul.bf16.gmra.mxu0 %v909
      %v1194 = vpop.f32.mrf.mxu0
      %v1195 = vadd.f32 %v1182, %v1194
      %v1196 = vpop.f32.mrf.mxu0
      %1197 = vdwg.mxu0
      %1198 = vmatpush.bf16.msra.mxu0 %v1131
      %1199 = vmatpush.bf16.msra.mxu0 %v1130
      %1200 = vmatpush.bf16.msra.mxu0 %v1129
      %1201 = vmatpush.bf16.msra.mxu0 %v1128
      %1202 = vmatpush.bf16.msra.mxu0 %v1127
      %1203 = vmatpush.bf16.msra.mxu0 %v1126
      %1204 = vmatpush.bf16.msra.mxu0 %v1125
      %1205 = vmatpush.bf16.msra.mxu0 %v1124
      %1206 = vmatmul.bf16.gmra.mxu0 %v910
      %v1207 = vpop.f32.mrf.mxu0
      %v1208 = vadd.f32 %v1195, %v1207
      %v1209 = vpop.f32.mrf.mxu0
      %1210 = vdwg.mxu0
      %1211 = vmatpush.bf16.msra.mxu0 %v1139
      %1212 = vmatpush.bf16.msra.mxu0 %v1138
      %1213 = vmatpush.bf16.msra.mxu0 %v1137
      %1214 = vmatpush.bf16.msra.mxu0 %v1136
      %1215 = vmatpush.bf16.msra.mxu0 %v1135
      %1216 = vmatpush.bf16.msra.mxu0 %v1134
      %1217 = vmatpush.bf16.msra.mxu0 %v1133
      %1218 = vmatpush.bf16.msra.mxu0 %v1132
      %1219 = vmatmul.bf16.gmra.mxu0 %v911
      %v1220 = vpop.f32.mrf.mxu0
      %v1221 = vadd.f32 %v1208, %v1220
      %v1222 = vpop.f32.mrf.mxu0
      %1223 = vdwg.mxu0
      %v1224 = vmax.f32 %v1221, 0.0
      %v1225 = vld [vmem:[%s571] sm:$0x1]
      %v1227 = vperm.slane %v1225, 0
      %v1229 = vmul.f32 %v1224, %v1227
      %1230 = vadd.xlane.f32.xlu0 %v1229
      %v1231 = vpop.xlane.xlu0 %1230
      %v1232 = vld [vmem:[%s0] sm:$0xff]
      %v1233 = vlaneseq
      %v1234 = vand.u32 %v1233, 127
      %vm1235 = vcmask 31744
      %v1236 = vsel %vm1235, %v1232, -inf
      %1237 = vmax.xlane.f32.xlu0 %v1236
      %v1238 = vpop.xlane.xlu0 %1237
      %vm1239 = vcmp.eq.f32.partialorder %v1232, %v1238
      %v1240 = vsel %vm1239, %v1234, 4
      %v1241 = vsel %vm1235, %v1240, 2147483647
      %v1242 = vand.u32 %v1241, 65535
      %v1243 = vshra.s32 %v1241, 16
      %v1244 = vcvt.s32.f32 %v1242
      %v1245 = vcvt.s32.f32 %v1243
      %1246 = vmin.xlane.f32.xlu0 %v1245
      %v1247 = vpop.xlane.xlu0 %1246
      %vm1248 = vcmp.eq.f32.partialorder %v1245, %v1247
      %v1249 = vsel %vm1248, %v1244, inf
      %1250 = vmin.xlane.f32.xlu0 %v1249
      %v1251 = vpop.xlane.xlu0 %1250
      %v1252 = vcvt.f32.s32 %v1251
      %v1253 = vcvt.f32.s32 %v1247
      %v1254 = vshll.u32 %v1253, 16
      %v1255 = vadd.s32 %v1254, %v1252
      %v1256 = vstv %s27
      %vm1257 = vcmp.eq.s32.totalorder %v1255, %v1256
      %v1258 = vsel %vm1257, 1, 0
      %v1259 = vcvt.s32.f32 %v1258
      %v1260 = vld [vmem:[#allocation3] sm:$0xff]
      %v1261 = vmul.f32 %v1259, %v1231
      %v1262 = vadd.f32 %v1260, %v1261
      %vm1263 = vcmask 7168
      %1264 = vst.msk [vmem:[#allocation3] sm:$0xff] %vm1263, %v1262
      %p1265 = scmp.eq.s32.totalorder %s27, 3
      // Predicated region
      $region89: #{embedding_net_forward.1} parent=83 // pred_check
        %p1266 = pneg %p1265
      $region90: #{embedding_net_forward.1} parent=83 // pred_check_branch
        %1268 = sbr.rel (%p1266) target = $region92
      $region91: #{embedding_net_forward.1} parent=83 // pred_region
        %vm1269 = vcmp.eq.s32.totalorder %v1234, %v1255
        %v1270 = vsel %vm1269, 1, 0
        %v1271 = vcvt.s32.f32 %v1270
        %v1272 = vld [vmem:[%s15] sm:$0x1]
        %v1274 = vperm.slane %v1272, 0
        %v1276 = vmul.f32 %v1271, %v1274
        %v1277 = vsel %vm1235, %v1276, 0.0
        %1278 = vadd.xlane.f32.xlu0 %v1277
        %v1279 = vpop.xlane.xlu0 %1278
        %v1280 = vld [vmem:[#allocation3] sm:$0xff]
        %v1281 = vadd.f32 %v1280, %v1279
        %v1282 = vxor.u32 %v1281, 2147483648
        %v1283 = vmul.f32 %v1282, 1.442695
        %v1284 = vpow.pop %v1283
        %v1285 = vadd.f32 %v1284, 1.0
        %v1286 = vrcp.pop %v1285
        %v1287 = vmul.f32 %v1285, %v1286
        %v1288 = vsub.f32 1.0, %v1287
        %v1289 = vmul.f32 %v1286, %v1288
        %v1290 = vadd.f32 %v1286, %v1289
        %vm1291 = vweird.f32 %v1285
        %vm1292 = vweird.f32 %v1286
        %vm1293 = vmor %vm1291, %vm1292
        %v1294 = vsel %vm1293, %v1286, %v1290
        %v1295 = vand.u32 2147483647, %v1285
        %vm1296 = vcmp.eq.f32.partialorder %v1295, 8.507059e+37
        %v1297 = vand.u32 %v1285, 2147483648
        %v1298 = vor.u32 1.1754944e-38, %v1297
        %v1299 = vsel %vm1296, %v1298, %v1294
        %v1300 = vmul.f32 1.0, %v1299
        %1302 = vset.pattern.permute.xlu0 0
        %1303 = vperm.xlu0 %1302, %v1300
        %v1304 = vpop.permute.xlu0 %1303
        %1306 = vst [vmem:[%s16] sm:$0xff] %v1304
      $region92: #{embedding_net_forward.1} parent=83 // pred_fallthru
        _
      // Predicated region
      $region93: #{embedding_net_forward.1} parent=83 // pred_check
        %p1307 = pneg %p401
      $region94: #{embedding_net_forward.1} parent=83 // pred_check_branch
        %1309 = sbr.rel (%p1307) target = $region96
      $region95: #{embedding_net_forward.1} parent=83 // pred_region
        _
      $region96: #{embedding_net_forward.1} parent=83 // pred_fallthru
        _
      // Predicated region
      $region97: #{embedding_net_forward.1} parent=83 // pred_check
        %p1310 = pneg %p401
      $region98: #{embedding_net_forward.1} parent=83 // pred_check_branch
        %1312 = sbr.rel (%p1310) target = $region100
      $region99: #{embedding_net_forward.1} parent=83 // pred_region
        _
      $region100: #{embedding_net_forward.1} parent=83 // pred_fallthru
        _
    $region84: #{embedding_net_forward.1} parent=5 // pred_fallthru
      _
    %p1313 = scmp.le.s32.totalorder 2, %s22
    // Predicated region
    $region101: #{embedding_net_forward.1} parent=5 // pred_check
      %p1314 = pneg %p1313
    $region102: #{embedding_net_forward.1} parent=5 // pred_check_branch
      %1316 = sbr.rel (%p1314) target = $region104
    $region103: #{embedding_net_forward.1} parent=5 // pred_region
      %s1317 = ssub.s32 %s22, 2
    $region104: #{embedding_net_forward.1} parent=5 // pred_fallthru
      _
  $region6: #{embedding_net_forward.1} parent=0 // loop_footer
    %s26 = sadd.s32 1, %s22
  $region7: #{embedding_net_forward.1} parent=0 // loop_footer_branch
    %21 = sbr.rel target = $region3
  $region8: #{embedding_net_forward.1} parent=0 // loop_exit
    _

</llo_original>
